<compile_context>
chip_gen: v5e
topology: v5e:2x2
jax: 0.10.0
libtpu: 0.0.40
codegen_flags: <defaults>
</compile_context>

<pallas_src>
import numpy as np
import jax
import jax.numpy as jnp
from jax.experimental import pallas as pl
from jax.experimental.pallas import tpu as pltpu


def make_motion_ae_kernel(T, Bc, H, H2, H4, F, mask_static, bias_offsets):
    """Build the kernel closure for static (T, Bc, H, mask)."""
    o_bfc, o_bih, o_bhn, o_bdec, o_b1, o_b2 = bias_offsets

    def kernel(obs_ref,        # VMEM (T*Bc, F)  time-major flattened obs chunk
               wfc_ref,        # (F, H2)   encoder_fc weight (transposed)
               wih_e_ref,      # (H2, 3H)  encoder GRU input weights
               whh_e_ref,      # (H, 3H)   encoder GRU hidden weights
               wdx_ref,        # (F, 4H)   decoder GRU x-side  [i_r|i_z|i_n|0]
               wdh_ref,        # (H, 4H)   decoder GRU h-side  [h_r|h_z|0|h_n]
               w1_ref, w2_ref, # decoder_fc weights (H,H4), (H4,F)
               bias_ref,       # (1, 6*128) packed biases, 128-lane aligned
               out_ref):       # VMEM (T*Bc, F)
        # ---- hoist all weight / bias loads (no CSE of repeated ref loads) ----
        obs_all = obs_ref[...]                                       # (T*Bc, F)
        wfc = wfc_ref[...]
        wih_e = wih_e_ref[...]
        whh_e = whh_e_ref[...]
        wdx = wdx_ref[...]
        wdh = wdh_ref[...]
        w1 = w1_ref[...]
        w2 = w2_ref[...]

        bfc = bias_ref[:, o_bfc:o_bfc + H2]            # (1, H2)
        bih_e = bias_ref[:, o_bih:o_bih + 3 * H]       # (1, 3H)  (bhh_rz folded in)
        bhh_n = bias_ref[:, o_bhn:o_bhn + H]           # (1, H)   encoder hidden n-bias
        b_dec = bias_ref[:, o_bdec:o_bdec + 4 * H]     # (1, 4H)
        b1 = bias_ref[:, o_b1:o_b1 + H4]               # (1, H4)
        b2 = bias_ref[:, o_b2:o_b2 + F]                # (1, F)

        # ---- encoder input path hoisted over all T steps (batched matmuls) ----
        e_all = jnp.maximum(
            jnp.dot(obs_all, wfc, preferred_element_type=jnp.float32) + bfc, 0.0)
        gi_all = (jnp.dot(e_all, wih_e, preferred_element_type=jnp.float32)
                  + bih_e)                                           # (T*Bc, 3H)

        # ---- decoder x-side input path hoisted over all T steps (used by
        #      step 0 and every teacher-forced step) ----
        gx_all = (jnp.dot(obs_all, wdx, preferred_element_type=jnp.float32)
                  + b_dec)                                           # (T*Bc, 4H)

        # ---- encoder recurrence (fully unrolled; one matmul per step) ----
        h = jnp.zeros((Bc, H), jnp.float32)
        for t in range(T):
            gi = gi_all[t * Bc:(t + 1) * Bc]                         # static slice
            gh = jnp.dot(h, whh_e, preferred_element_type=jnp.float32)
            rz = jax.nn.sigmoid(gi[:, :2 * H] + gh[:, :2 * H])       # one EUP launch
            r = rz[:, :H]
            z = rz[:, H:]
            n = jnp.tanh(gi[:, 2 * H:] + r * (gh[:, 2 * H:] + bhh_n))
            h = (1.0 - z) * n + z * h

        # ---- fused decoder GRU step (x-side gate input precomputed) ----
        def dec_gru(gx, hh):
            gh = jnp.dot(hh, wdh, preferred_element_type=jnp.float32)
            g = gx + gh            # columns: [i_r+h_r | i_z+h_z | i_n | h_n]
            rz = jax.nn.sigmoid(g[:, :2 * H])
            r = rz[:, :H]
            z = rz[:, H:]
            n = jnp.tanh(g[:, 2 * H:3 * H] + r * g[:, 3 * H:])
            return (1.0 - z) * n + z * hh

        def dec_fc(hh):
            y = jnp.maximum(
                jnp.dot(hh, w1, preferred_element_type=jnp.float32) + b1, 0.0)
            return jnp.dot(y, w2, preferred_element_type=jnp.float32) + b2

        # ---- decoder step 0 (init motion, seeded with encoder hidden) ----
        init_motion = obs_all[0:Bc]                                   # (Bc, F)
        h = dec_gru(gx_all[0:Bc], h)
        x = dec_fc(h) + init_motion
        xs = [x]

        # ---- decoder steps 1..T-1 (static teacher forcing, cumulative resid.) ----
        for t in range(1, T):
            if mask_static[t - 1]:
                gx = gx_all[t * Bc:(t + 1) * Bc]                      # hoisted
            else:
                gx = (jnp.dot(x, wdx, preferred_element_type=jnp.float32)
                      + b_dec)
            h = dec_gru(gx, h)
            x = dec_fc(h) + x
            xs.append(x)

        # single lane-dense store of all T outputs
        out_ref[...] = jnp.concatenate(xs, axis=0)                    # (T*Bc, F)

    return kernel


def motion_ae_forward(params, observation, mask, *, batch_chunk=None):
    """observation: (B, T, 4) float32 ; mask: (T-1,) bool -> (B, T, 4).

    NOTE: the teacher-forcing mask is specialized statically into the kernel
    (it recompiles when the mask changes).
    """
    B, T, F = observation.shape
    H = params["whh_d"].shape[1]
    H2 = params["w_fc"].shape[0]
    H4 = params["w1"].shape[0]

    mask_static = tuple(bool(m) for m in np.asarray(mask))
    assert len(mask_static) == T - 1

    Bc = B if batch_chunk is None else int(batch_chunk)
    assert B % Bc == 0, "batch must divide evenly into chunks"
    nC = B // Bc

    obs = observation.astype(jnp.float32)
    # (B,T,F) -> (nC, T*Bc, F), time-major inside each chunk
    obs_chunks = (obs.reshape(nC, Bc, T, F)
                     .transpose(0, 2, 1, 3)
                     .reshape(nC, T * Bc, F))

    # ---- encoder weights (transposed for row-major matmul) ----
    wfc_t = params["w_fc"].T.astype(jnp.float32)                      # (F, H2)
    wih_e_t = params["wih_e"].T.astype(jnp.float32)                   # (H2, 3H)
    whh_e_t = params["whh_e"].T.astype(jnp.float32)                   # (H, 3H)

    # ---- fused decoder GRU weight, pre-split into x-side / h-side blocks.
    #      output columns: [ i_r+h_r | i_z+h_z | i_n | h_n ] (width 4H) ----
    wih_d_t = params["wih_d"].T.astype(jnp.float32)                   # (F, 3H)
    whh_d_t = params["whh_d"].T.astype(jnp.float32)                   # (H, 3H)
    w_dec_x = jnp.concatenate(
        [wih_d_t, jnp.zeros((F, H), jnp.float32)], axis=1)            # (F, 4H)
    w_dec_h = jnp.concatenate(
        [whh_d_t[:, :2 * H], jnp.zeros((H, H), jnp.float32),
         whh_d_t[:, 2 * H:]], axis=1)                                 # (H, 4H)
    b_dec = jnp.concatenate([
        params["bih_d"][:2 * H] + params["bhh_d"][:2 * H],
        params["bih_d"][2 * H:],
        params["bhh_d"][2 * H:],
    ]).astype(jnp.float32)                                            # (4H,)

    # ---- encoder biases: fold bhh_e[:2H] into the hoisted input bias ----
    bih_packed = jnp.concatenate([
        params["bih_e"][:2 * H] + params["bhh_e"][:2 * H],
        params["bih_e"][2 * H:],
    ]).astype(jnp.float32)                                            # (3H,)
    bhh_n_e = params["bhh_e"][2 * H:].astype(jnp.float32)             # (H,)

    w1_t = params["w1"].T.astype(jnp.float32)                         # (H, H4)
    w2_t = params["w2"].T.astype(jnp.float32)                         # (H4, F)

    # ---- pack all biases into one VMEM slab, each at a 128-lane offset ----
    bias_list = [params["b_fc"].astype(jnp.float32), bih_packed, bhh_n_e,
                 b_dec, params["b1"].astype(jnp.float32),
                 params["b2"].astype(jnp.float32)]
    pieces, offsets, off = [], [], 0
    for v in bias_list:
        n = v.shape[0]
        padded = ((n + 127) // 128) * 128
        offsets.append(off)
        pieces.append(jnp.pad(v, (0, padded - n)))
        off += padded
    bias_slab = jnp.concatenate(pieces)[None, :]                      # (1, off)

    kernel = make_motion_ae_kernel(T, Bc, H, H2, H4, F,
                                   mask_static, tuple(offsets))

    def const_spec(a):
        return pl.BlockSpec(a.shape, lambda c: (0,) * a.ndim)

    out_chunks = pl.pallas_call(
        kernel,
        out_shape=jax.ShapeDtypeStruct((nC, T * Bc, F), jnp.float32),
        grid=(nC,),
        in_specs=[
            pl.BlockSpec((None, T * Bc, F), lambda c: (c, 0, 0)),     # obs chunk
            const_spec(wfc_t), const_spec(wih_e_t), const_spec(whh_e_t),
            const_spec(w_dec_x), const_spec(w_dec_h),
            const_spec(w1_t), const_spec(w2_t),
            const_spec(bias_slab),
        ],
        out_specs=pl.BlockSpec((None, T * Bc, F), lambda c: (c, 0, 0)),
        compiler_params=pltpu.CompilerParams(
            dimension_semantics=("parallel",)),
    )(obs_chunks, wfc_t, wih_e_t, whh_e_t, w_dec_x, w_dec_h,
      w1_t, w2_t, bias_slab)

    out = (out_chunks.reshape(nC, T, Bc, F)
                     .transpose(0, 2, 1, 3)
                     .reshape(B, T, F))
    return out


def init_params(key, hidden_state):
    """Deterministic parameters with the same shapes as motion_ae(hidden_state)."""
    H = hidden_state
    H2, H4 = H // 2, H // 4
    ks = jax.random.split(key, 14)

    def u(k, shape, fan_in):
        bound = 1.0 / np.sqrt(fan_in)
        return jax.random.uniform(k, shape, jnp.float32, -bound, bound)

    return dict(
        # encoder_fc: Linear(4, H//2)
        w_fc=u(ks[0], (H2, 4), 4), b_fc=u(ks[1], (H2,), 4),
        # encoder GRU(H//2 -> H)
        wih_e=u(ks[2], (3 * H, H2), H), whh_e=u(ks[3], (3 * H, H), H),
        bih_e=u(ks[4], (3 * H,), H), bhh_e=u(ks[5], (3 * H,), H),
        # decoder GRU(4 -> H)
        wih_d=u(ks[6], (3 * H, 4), H), whh_d=u(ks[7], (3 * H, H), H),
        bih_d=u(ks[8], (3 * H,), H), bhh_d=u(ks[9], (3 * H,), H),
        # decoder_fc: Linear(H, H//4) -> ReLU -> Linear(H//4, 4)
        w1=u(ks[10], (H4, H), H), b1=u(ks[11], (H4,), H),
        w2=u(ks[12], (4, H4), H4), b2=u(ks[13], (4,), H4),
    )


def forward_ref(params, observation, mask):
    """Pure-JAX reference mirroring the PyTorch forward (for verification)."""
    H = params["whh_d"].shape[1]
    B, T, _ = observation.shape

    def gru(x, h, wih, whh, bih, bhh):
        gi = x @ wih.T + bih
        gh = h @ whh.T + bhh
        r = jax.nn.sigmoid(gi[:, :H] + gh[:, :H])
        z = jax.nn.sigmoid(gi[:, H:2 * H] + gh[:, H:2 * H])
        n = jnp.tanh(gi[:, 2 * H:] + r * gh[:, 2 * H:])
        return (1 - z) * n + z * h

    def dec_fc(h):
        y = jnp.maximum(h @ params["w1"].T + params["b1"], 0.0)
        return y @ params["w2"].T + params["b2"]

    h_e = jnp.zeros((B, H), jnp.float32)
    for t in range(T):
        e = jnp.maximum(observation[:, t] @ params["w_fc"].T + params["b_fc"], 0.0)
        h_e = gru(e, h_e, params["wih_e"], params["whh_e"],
                  params["bih_e"], params["bhh_e"])

    mask_np = np.asarray(mask)
    init = observation[:, 0]
    h = gru(init, h_e, params["wih_d"], params["whh_d"],
            params["bih_d"], params["bhh_d"])
    x = dec_fc(h) + init
    outs = [x]
    for t in range(1, T):
        x_in = observation[:, t] if mask_np[t - 1] else x
        h = gru(x_in, h, params["wih_d"], params["whh_d"],
                params["bih_d"], params["bhh_d"])
        x = dec_fc(h) + x
        outs.append(x)
    return jnp.stack(outs, axis=1)


if __name__ == "__main__":
    B, T, HIDDEN = 2, 8, 32
    TF = 0.5

    key = jax.random.PRNGKey(0)
    params = init_params(key, HIDDEN)
    observation = jax.random.normal(jax.random.fold_in(key, 123), (B, T, 4),
                                    jnp.float32)

    # Host-side teacher-forcing mask (matches `np.random.uniform(size=T-1) < tf`),
    # made deterministic with a fixed seed.
    np.random.seed(0)
    mask = jnp.asarray(np.random.uniform(size=T - 1) < TF)

    out = motion_ae_forward(params, observation, mask)
    out = jax.block_until_ready(out)

    ref = forward_ref(params, observation, mask)
    np.testing.assert_allclose(np.asarray(out), np.asarray(ref),
                               rtol=1e-3, atol=1e-4)

    print("KERNEL_OK")
</pallas_src>

<mosaic_0001>
module attributes {stable_mosaic.version = 11 : i64} {
  func.func @kernel(%arg0: i32, %arg1: memref<1x16x4xf32, #tpu.memory_space<vmem>>, %arg2: memref<4x16xf32, #tpu.memory_space<vmem>>, %arg3: memref<16x96xf32, #tpu.memory_space<vmem>>, %arg4: memref<32x96xf32, #tpu.memory_space<vmem>>, %arg5: memref<4x128xf32, #tpu.memory_space<vmem>>, %arg6: memref<32x128xf32, #tpu.memory_space<vmem>>, %arg7: memref<32x8xf32, #tpu.memory_space<vmem>>, %arg8: memref<8x4xf32, #tpu.memory_space<vmem>>, %arg9: memref<1x768xf32, #tpu.memory_space<vmem>>, %arg10: memref<1x16x4xf32, #tpu.memory_space<vmem>>) attributes {dimension_semantics = [#tpu.dimension_semantics<parallel>], iteration_bounds = array<i64: 1>, scalar_prefetch = 0 : i64, scratch_operands = 0 : i64, tpu.core_type = #tpu.core_type<tc>, window_params = [{transform_indices = @transform_0, window_bounds = array<i64: 1, 16, 4>}, {pipeline_mode = #tpu.pipeline_mode<synchronous>, transform_indices = @transform_1, window_bounds = array<i64: 4, 16>}, {pipeline_mode = #tpu.pipeline_mode<synchronous>, transform_indices = @transform_2, window_bounds = array<i64: 16, 96>}, {pipeline_mode = #tpu.pipeline_mode<synchronous>, transform_indices = @transform_3, window_bounds = array<i64: 32, 96>}, {pipeline_mode = #tpu.pipeline_mode<synchronous>, transform_indices = @transform_4, window_bounds = array<i64: 4, 128>}, {pipeline_mode = #tpu.pipeline_mode<synchronous>, transform_indices = @transform_5, window_bounds = array<i64: 32, 128>}, {pipeline_mode = #tpu.pipeline_mode<synchronous>, transform_indices = @transform_6, window_bounds = array<i64: 32, 8>}, {pipeline_mode = #tpu.pipeline_mode<synchronous>, transform_indices = @transform_7, window_bounds = array<i64: 8, 4>}, {pipeline_mode = #tpu.pipeline_mode<synchronous>, transform_indices = @transform_8, window_bounds = array<i64: 1, 768>}, {transform_indices = @transform_9, window_bounds = array<i64: 1, 16, 4>}]} {
    %c0 = arith.constant 0 : index
    %c0_0 = arith.constant 0 : index
    %c0_1 = arith.constant 0 : index
    %0 = vector.load %arg1[%c0, %c0_0, %c0_1] : memref<1x16x4xf32, #tpu.memory_space<vmem>>, vector<1x16x4xf32>
    %1 = vector.shape_cast %0 : vector<1x16x4xf32> to vector<16x4xf32>
    %c0_2 = arith.constant 0 : index
    %c0_3 = arith.constant 0 : index
    %2 = vector.load %arg2[%c0_2, %c0_3] : memref<4x16xf32, #tpu.memory_space<vmem>>, vector<4x16xf32>
    %c0_4 = arith.constant 0 : index
    %c0_5 = arith.constant 0 : index
    %3 = vector.load %arg3[%c0_4, %c0_5] : memref<16x96xf32, #tpu.memory_space<vmem>>, vector<16x96xf32>
    %c0_6 = arith.constant 0 : index
    %c0_7 = arith.constant 0 : index
    %4 = vector.load %arg4[%c0_6, %c0_7] : memref<32x96xf32, #tpu.memory_space<vmem>>, vector<32x96xf32>
    %c0_8 = arith.constant 0 : index
    %c0_9 = arith.constant 0 : index
    %5 = vector.load %arg5[%c0_8, %c0_9] : memref<4x128xf32, #tpu.memory_space<vmem>>, vector<4x128xf32>
    %c0_10 = arith.constant 0 : index
    %c0_11 = arith.constant 0 : index
    %6 = vector.load %arg6[%c0_10, %c0_11] : memref<32x128xf32, #tpu.memory_space<vmem>>, vector<32x128xf32>
    %c0_12 = arith.constant 0 : index
    %c0_13 = arith.constant 0 : index
    %7 = vector.load %arg7[%c0_12, %c0_13] : memref<32x8xf32, #tpu.memory_space<vmem>>, vector<32x8xf32>
    %c0_14 = arith.constant 0 : index
    %c0_15 = arith.constant 0 : index
    %8 = vector.load %arg8[%c0_14, %c0_15] : memref<8x4xf32, #tpu.memory_space<vmem>>, vector<8x4xf32>
    %c0_16 = arith.constant 0 : index
    %c0_17 = arith.constant 0 : index
    %9 = vector.load %arg9[%c0_16, %c0_17] : memref<1x768xf32, #tpu.memory_space<vmem>>, vector<1x16xf32>
    %c0_18 = arith.constant 0 : index
    %c128 = arith.constant 128 : index
    %10 = vector.load %arg9[%c0_18, %c128] : memref<1x768xf32, #tpu.memory_space<vmem>>, vector<1x96xf32>
    %c0_19 = arith.constant 0 : index
    %c256 = arith.constant 256 : index
    %11 = vector.load %arg9[%c0_19, %c256] : memref<1x768xf32, #tpu.memory_space<vmem>>, vector<1x32xf32>
    %c0_20 = arith.constant 0 : index
    %c384 = arith.constant 384 : index
    %12 = vector.load %arg9[%c0_20, %c384] : memref<1x768xf32, #tpu.memory_space<vmem>>, vector<1x128xf32>
    %c0_21 = arith.constant 0 : index
    %c512 = arith.constant 512 : index
    %13 = vector.load %arg9[%c0_21, %c512] : memref<1x768xf32, #tpu.memory_space<vmem>>, vector<1x8xf32>
    %c0_22 = arith.constant 0 : index
    %c640 = arith.constant 640 : index
    %14 = vector.load %arg9[%c0_22, %c640] : memref<1x768xf32, #tpu.memory_space<vmem>>, vector<1x4xf32>
    %cst = arith.constant dense<0.000000e+00> : vector<16x16xf32>
    %15 = tpu.matmul %1, %2, %cst {dimension_numbers = #tpu.dot_dimension_numbers<[1], [0], [0], [1], [0, 0, 1, 1], [], []>} : vector<16x4xf32>, vector<4x16xf32>, vector<16x16xf32> -> vector<16x16xf32>
    %16 = vector.broadcast %9 : vector<1x16xf32> to vector<16x16xf32>
    %17 = arith.addf %15, %16 : vector<16x16xf32>
    %cst_23 = arith.constant 0.000000e+00 : f32
    %18 = vector.broadcast %cst_23 : f32 to vector<16x16xf32>
    %19 = arith.maximumf %17, %18 : vector<16x16xf32>
    %cst_24 = arith.constant dense<0.000000e+00> : vector<16x96xf32>
    %20 = tpu.matmul %19, %3, %cst_24 {dimension_numbers = #tpu.dot_dimension_numbers<[1], [0], [0], [1], [0, 0, 1, 1], [], []>} : vector<16x16xf32>, vector<16x96xf32>, vector<16x96xf32> -> vector<16x96xf32>
    %21 = vector.broadcast %10 : vector<1x96xf32> to vector<16x96xf32>
    %22 = arith.addf %20, %21 : vector<16x96xf32>
    %cst_25 = arith.constant dense<0.000000e+00> : vector<16x128xf32>
    %23 = tpu.matmul %1, %5, %cst_25 {dimension_numbers = #tpu.dot_dimension_numbers<[1], [0], [0], [1], [0, 0, 1, 1], [], []>} : vector<16x4xf32>, vector<4x128xf32>, vector<16x128xf32> -> vector<16x128xf32>
    %24 = vector.broadcast %12 : vector<1x128xf32> to vector<16x128xf32>
    %25 = arith.addf %23, %24 : vector<16x128xf32>
    %cst_26 = arith.constant 0.000000e+00 : f32
    %26 = vector.broadcast %cst_26 : f32 to vector<2x32xf32>
    %27 = vector.extract_strided_slice %22 {offsets = [0, 0], sizes = [2, 96], strides = [1, 1]} : vector<16x96xf32> to vector<2x96xf32>
    %cst_27 = arith.constant dense<0.000000e+00> : vector<2x96xf32>
    %28 = tpu.matmul %26, %4, %cst_27 {dimension_numbers = #tpu.dot_dimension_numbers<[1], [0], [0], [1], [0, 0, 1, 1], [], []>} : vector<2x32xf32>, vector<32x96xf32>, vector<2x96xf32> -> vector<2x96xf32>
    %29 = vector.extract_strided_slice %27 {offsets = [0, 0], sizes = [2, 64], strides = [1, 1]} : vector<2x96xf32> to vector<2x64xf32>
    %30 = vector.extract_strided_slice %28 {offsets = [0, 0], sizes = [2, 64], strides = [1, 1]} : vector<2x96xf32> to vector<2x64xf32>
    %31 = arith.addf %29, %30 : vector<2x64xf32>
    %32 = arith.negf %31 : vector<2x64xf32>
    %33 = math.exp %32 : vector<2x64xf32>
    %cst_28 = arith.constant 1.000000e+00 : f32
    %34 = vector.broadcast %cst_28 : f32 to vector<2x64xf32>
    %35 = arith.addf %34, %33 : vector<2x64xf32>
    %36 = arith.divf %34, %35 : vector<2x64xf32>
    %37 = vector.extract_strided_slice %36 {offsets = [0, 0], sizes = [2, 32], strides = [1, 1]} : vector<2x64xf32> to vector<2x32xf32>
    %38 = vector.extract_strided_slice %36 {offsets = [0, 32], sizes = [2, 32], strides = [1, 1]} : vector<2x64xf32> to vector<2x32xf32>
    %39 = vector.extract_strided_slice %27 {offsets = [0, 64], sizes = [2, 32], strides = [1, 1]} : vector<2x96xf32> to vector<2x32xf32>
    %40 = vector.extract_strided_slice %28 {offsets = [0, 64], sizes = [2, 32], strides = [1, 1]} : vector<2x96xf32> to vector<2x32xf32>
    %41 = vector.broadcast %11 : vector<1x32xf32> to vector<2x32xf32>
    %42 = arith.addf %40, %41 : vector<2x32xf32>
    %43 = arith.mulf %37, %42 : vector<2x32xf32>
    %44 = arith.addf %39, %43 : vector<2x32xf32>
    %45 = math.tanh %44 : vector<2x32xf32>
    %cst_29 = arith.constant 1.000000e+00 : f32
    %46 = vector.broadcast %cst_29 : f32 to vector<2x32xf32>
    %47 = arith.subf %46, %38 : vector<2x32xf32>
    %48 = arith.mulf %47, %45 : vector<2x32xf32>
    %49 = arith.mulf %38, %26 : vector<2x32xf32>
    %50 = arith.addf %48, %49 : vector<2x32xf32>
    %51 = vector.extract_strided_slice %22 {offsets = [2, 0], sizes = [2, 96], strides = [1, 1]} : vector<16x96xf32> to vector<2x96xf32>
    %cst_30 = arith.constant dense<0.000000e+00> : vector<2x96xf32>
    %52 = tpu.matmul %50, %4, %cst_30 {dimension_numbers = #tpu.dot_dimension_numbers<[1], [0], [0], [1], [0, 0, 1, 1], [], []>} : vector<2x32xf32>, vector<32x96xf32>, vector<2x96xf32> -> vector<2x96xf32>
    %53 = vector.extract_strided_slice %51 {offsets = [0, 0], sizes = [2, 64], strides = [1, 1]} : vector<2x96xf32> to vector<2x64xf32>
    %54 = vector.extract_strided_slice %52 {offsets = [0, 0], sizes = [2, 64], strides = [1, 1]} : vector<2x96xf32> to vector<2x64xf32>
    %55 = arith.addf %53, %54 : vector<2x64xf32>
    %56 = arith.negf %55 : vector<2x64xf32>
    %57 = math.exp %56 : vector<2x64xf32>
    %cst_31 = arith.constant 1.000000e+00 : f32
    %58 = vector.broadcast %cst_31 : f32 to vector<2x64xf32>
    %59 = arith.addf %58, %57 : vector<2x64xf32>
    %60 = arith.divf %58, %59 : vector<2x64xf32>
    %61 = vector.extract_strided_slice %60 {offsets = [0, 0], sizes = [2, 32], strides = [1, 1]} : vector<2x64xf32> to vector<2x32xf32>
    %62 = vector.extract_strided_slice %60 {offsets = [0, 32], sizes = [2, 32], strides = [1, 1]} : vector<2x64xf32> to vector<2x32xf32>
    %63 = vector.extract_strided_slice %51 {offsets = [0, 64], sizes = [2, 32], strides = [1, 1]} : vector<2x96xf32> to vector<2x32xf32>
    %64 = vector.extract_strided_slice %52 {offsets = [0, 64], sizes = [2, 32], strides = [1, 1]} : vector<2x96xf32> to vector<2x32xf32>
    %65 = vector.broadcast %11 : vector<1x32xf32> to vector<2x32xf32>
    %66 = arith.addf %64, %65 : vector<2x32xf32>
    %67 = arith.mulf %61, %66 : vector<2x32xf32>
    %68 = arith.addf %63, %67 : vector<2x32xf32>
    %69 = math.tanh %68 : vector<2x32xf32>
    %cst_32 = arith.constant 1.000000e+00 : f32
    %70 = vector.broadcast %cst_32 : f32 to vector<2x32xf32>
    %71 = arith.subf %70, %62 : vector<2x32xf32>
    %72 = arith.mulf %71, %69 : vector<2x32xf32>
    %73 = arith.mulf %62, %50 : vector<2x32xf32>
    %74 = arith.addf %72, %73 : vector<2x32xf32>
    %75 = vector.extract_strided_slice %22 {offsets = [4, 0], sizes = [2, 96], strides = [1, 1]} : vector<16x96xf32> to vector<2x96xf32>
    %cst_33 = arith.constant dense<0.000000e+00> : vector<2x96xf32>
    %76 = tpu.matmul %74, %4, %cst_33 {dimension_numbers = #tpu.dot_dimension_numbers<[1], [0], [0], [1], [0, 0, 1, 1], [], []>} : vector<2x32xf32>, vector<32x96xf32>, vector<2x96xf32> -> vector<2x96xf32>
    %77 = vector.extract_strided_slice %75 {offsets = [0, 0], sizes = [2, 64], strides = [1, 1]} : vector<2x96xf32> to vector<2x64xf32>
    %78 = vector.extract_strided_slice %76 {offsets = [0, 0], sizes = [2, 64], strides = [1, 1]} : vector<2x96xf32> to vector<2x64xf32>
    %79 = arith.addf %77, %78 : vector<2x64xf32>
    %80 = arith.negf %79 : vector<2x64xf32>
    %81 = math.exp %80 : vector<2x64xf32>
    %cst_34 = arith.constant 1.000000e+00 : f32
    %82 = vector.broadcast %cst_34 : f32 to vector<2x64xf32>
    %83 = arith.addf %82, %81 : vector<2x64xf32>
    %84 = arith.divf %82, %83 : vector<2x64xf32>
    %85 = vector.extract_strided_slice %84 {offsets = [0, 0], sizes = [2, 32], strides = [1, 1]} : vector<2x64xf32> to vector<2x32xf32>
    %86 = vector.extract_strided_slice %84 {offsets = [0, 32], sizes = [2, 32], strides = [1, 1]} : vector<2x64xf32> to vector<2x32xf32>
    %87 = vector.extract_strided_slice %75 {offsets = [0, 64], sizes = [2, 32], strides = [1, 1]} : vector<2x96xf32> to vector<2x32xf32>
    %88 = vector.extract_strided_slice %76 {offsets = [0, 64], sizes = [2, 32], strides = [1, 1]} : vector<2x96xf32> to vector<2x32xf32>
    %89 = vector.broadcast %11 : vector<1x32xf32> to vector<2x32xf32>
    %90 = arith.addf %88, %89 : vector<2x32xf32>
    %91 = arith.mulf %85, %90 : vector<2x32xf32>
    %92 = arith.addf %87, %91 : vector<2x32xf32>
    %93 = math.tanh %92 : vector<2x32xf32>
    %cst_35 = arith.constant 1.000000e+00 : f32
    %94 = vector.broadcast %cst_35 : f32 to vector<2x32xf32>
    %95 = arith.subf %94, %86 : vector<2x32xf32>
    %96 = arith.mulf %95, %93 : vector<2x32xf32>
    %97 = arith.mulf %86, %74 : vector<2x32xf32>
    %98 = arith.addf %96, %97 : vector<2x32xf32>
    %99 = vector.extract_strided_slice %22 {offsets = [6, 0], sizes = [2, 96], strides = [1, 1]} : vector<16x96xf32> to vector<2x96xf32>
    %cst_36 = arith.constant dense<0.000000e+00> : vector<2x96xf32>
    %100 = tpu.matmul %98, %4, %cst_36 {dimension_numbers = #tpu.dot_dimension_numbers<[1], [0], [0], [1], [0, 0, 1, 1], [], []>} : vector<2x32xf32>, vector<32x96xf32>, vector<2x96xf32> -> vector<2x96xf32>
    %101 = vector.extract_strided_slice %99 {offsets = [0, 0], sizes = [2, 64], strides = [1, 1]} : vector<2x96xf32> to vector<2x64xf32>
    %102 = vector.extract_strided_slice %100 {offsets = [0, 0], sizes = [2, 64], strides = [1, 1]} : vector<2x96xf32> to vector<2x64xf32>
    %103 = arith.addf %101, %102 : vector<2x64xf32>
    %104 = arith.negf %103 : vector<2x64xf32>
    %105 = math.exp %104 : vector<2x64xf32>
    %cst_37 = arith.constant 1.000000e+00 : f32
    %106 = vector.broadcast %cst_37 : f32 to vector<2x64xf32>
    %107 = arith.addf %106, %105 : vector<2x64xf32>
    %108 = arith.divf %106, %107 : vector<2x64xf32>
    %109 = vector.extract_strided_slice %108 {offsets = [0, 0], sizes = [2, 32], strides = [1, 1]} : vector<2x64xf32> to vector<2x32xf32>
    %110 = vector.extract_strided_slice %108 {offsets = [0, 32], sizes = [2, 32], strides = [1, 1]} : vector<2x64xf32> to vector<2x32xf32>
    %111 = vector.extract_strided_slice %99 {offsets = [0, 64], sizes = [2, 32], strides = [1, 1]} : vector<2x96xf32> to vector<2x32xf32>
    %112 = vector.extract_strided_slice %100 {offsets = [0, 64], sizes = [2, 32], strides = [1, 1]} : vector<2x96xf32> to vector<2x32xf32>
    %113 = vector.broadcast %11 : vector<1x32xf32> to vector<2x32xf32>
    %114 = arith.addf %112, %113 : vector<2x32xf32>
    %115 = arith.mulf %109, %114 : vector<2x32xf32>
    %116 = arith.addf %111, %115 : vector<2x32xf32>
    %117 = math.tanh %116 : vector<2x32xf32>
    %cst_38 = arith.constant 1.000000e+00 : f32
    %118 = vector.broadcast %cst_38 : f32 to vector<2x32xf32>
    %119 = arith.subf %118, %110 : vector<2x32xf32>
    %120 = arith.mulf %119, %117 : vector<2x32xf32>
    %121 = arith.mulf %110, %98 : vector<2x32xf32>
    %122 = arith.addf %120, %121 : vector<2x32xf32>
    %123 = vector.extract_strided_slice %22 {offsets = [8, 0], sizes = [2, 96], strides = [1, 1]} : vector<16x96xf32> to vector<2x96xf32>
    %cst_39 = arith.constant dense<0.000000e+00> : vector<2x96xf32>
    %124 = tpu.matmul %122, %4, %cst_39 {dimension_numbers = #tpu.dot_dimension_numbers<[1], [0], [0], [1], [0, 0, 1, 1], [], []>} : vector<2x32xf32>, vector<32x96xf32>, vector<2x96xf32> -> vector<2x96xf32>
    %125 = vector.extract_strided_slice %123 {offsets = [0, 0], sizes = [2, 64], strides = [1, 1]} : vector<2x96xf32> to vector<2x64xf32>
    %126 = vector.extract_strided_slice %124 {offsets = [0, 0], sizes = [2, 64], strides = [1, 1]} : vector<2x96xf32> to vector<2x64xf32>
    %127 = arith.addf %125, %126 : vector<2x64xf32>
    %128 = arith.negf %127 : vector<2x64xf32>
    %129 = math.exp %128 : vector<2x64xf32>
    %cst_40 = arith.constant 1.000000e+00 : f32
    %130 = vector.broadcast %cst_40 : f32 to vector<2x64xf32>
    %131 = arith.addf %130, %129 : vector<2x64xf32>
    %132 = arith.divf %130, %131 : vector<2x64xf32>
    %133 = vector.extract_strided_slice %132 {offsets = [0, 0], sizes = [2, 32], strides = [1, 1]} : vector<2x64xf32> to vector<2x32xf32>
    %134 = vector.extract_strided_slice %132 {offsets = [0, 32], sizes = [2, 32], strides = [1, 1]} : vector<2x64xf32> to vector<2x32xf32>
    %135 = vector.extract_strided_slice %123 {offsets = [0, 64], sizes = [2, 32], strides = [1, 1]} : vector<2x96xf32> to vector<2x32xf32>
    %136 = vector.extract_strided_slice %124 {offsets = [0, 64], sizes = [2, 32], strides = [1, 1]} : vector<2x96xf32> to vector<2x32xf32>
    %137 = vector.broadcast %11 : vector<1x32xf32> to vector<2x32xf32>
    %138 = arith.addf %136, %137 : vector<2x32xf32>
    %139 = arith.mulf %133, %138 : vector<2x32xf32>
    %140 = arith.addf %135, %139 : vector<2x32xf32>
    %141 = math.tanh %140 : vector<2x32xf32>
    %cst_41 = arith.constant 1.000000e+00 : f32
    %142 = vector.broadcast %cst_41 : f32 to vector<2x32xf32>
    %143 = arith.subf %142, %134 : vector<2x32xf32>
    %144 = arith.mulf %143, %141 : vector<2x32xf32>
    %145 = arith.mulf %134, %122 : vector<2x32xf32>
    %146 = arith.addf %144, %145 : vector<2x32xf32>
    %147 = vector.extract_strided_slice %22 {offsets = [10, 0], sizes = [2, 96], strides = [1, 1]} : vector<16x96xf32> to vector<2x96xf32>
    %cst_42 = arith.constant dense<0.000000e+00> : vector<2x96xf32>
    %148 = tpu.matmul %146, %4, %cst_42 {dimension_numbers = #tpu.dot_dimension_numbers<[1], [0], [0], [1], [0, 0, 1, 1], [], []>} : vector<2x32xf32>, vector<32x96xf32>, vector<2x96xf32> -> vector<2x96xf32>
    %149 = vector.extract_strided_slice %147 {offsets = [0, 0], sizes = [2, 64], strides = [1, 1]} : vector<2x96xf32> to vector<2x64xf32>
    %150 = vector.extract_strided_slice %148 {offsets = [0, 0], sizes = [2, 64], strides = [1, 1]} : vector<2x96xf32> to vector<2x64xf32>
    %151 = arith.addf %149, %150 : vector<2x64xf32>
    %152 = arith.negf %151 : vector<2x64xf32>
    %153 = math.exp %152 : vector<2x64xf32>
    %cst_43 = arith.constant 1.000000e+00 : f32
    %154 = vector.broadcast %cst_43 : f32 to vector<2x64xf32>
    %155 = arith.addf %154, %153 : vector<2x64xf32>
    %156 = arith.divf %154, %155 : vector<2x64xf32>
    %157 = vector.extract_strided_slice %156 {offsets = [0, 0], sizes = [2, 32], strides = [1, 1]} : vector<2x64xf32> to vector<2x32xf32>
    %158 = vector.extract_strided_slice %156 {offsets = [0, 32], sizes = [2, 32], strides = [1, 1]} : vector<2x64xf32> to vector<2x32xf32>
    %159 = vector.extract_strided_slice %147 {offsets = [0, 64], sizes = [2, 32], strides = [1, 1]} : vector<2x96xf32> to vector<2x32xf32>
    %160 = vector.extract_strided_slice %148 {offsets = [0, 64], sizes = [2, 32], strides = [1, 1]} : vector<2x96xf32> to vector<2x32xf32>
    %161 = vector.broadcast %11 : vector<1x32xf32> to vector<2x32xf32>
    %162 = arith.addf %160, %161 : vector<2x32xf32>
    %163 = arith.mulf %157, %162 : vector<2x32xf32>
    %164 = arith.addf %159, %163 : vector<2x32xf32>
    %165 = math.tanh %164 : vector<2x32xf32>
    %cst_44 = arith.constant 1.000000e+00 : f32
    %166 = vector.broadcast %cst_44 : f32 to vector<2x32xf32>
    %167 = arith.subf %166, %158 : vector<2x32xf32>
    %168 = arith.mulf %167, %165 : vector<2x32xf32>
    %169 = arith.mulf %158, %146 : vector<2x32xf32>
    %170 = arith.addf %168, %169 : vector<2x32xf32>
    %171 = vector.extract_strided_slice %22 {offsets = [12, 0], sizes = [2, 96], strides = [1, 1]} : vector<16x96xf32> to vector<2x96xf32>
    %cst_45 = arith.constant dense<0.000000e+00> : vector<2x96xf32>
    %172 = tpu.matmul %170, %4, %cst_45 {dimension_numbers = #tpu.dot_dimension_numbers<[1], [0], [0], [1], [0, 0, 1, 1], [], []>} : vector<2x32xf32>, vector<32x96xf32>, vector<2x96xf32> -> vector<2x96xf32>
    %173 = vector.extract_strided_slice %171 {offsets = [0, 0], sizes = [2, 64], strides = [1, 1]} : vector<2x96xf32> to vector<2x64xf32>
    %174 = vector.extract_strided_slice %172 {offsets = [0, 0], sizes = [2, 64], strides = [1, 1]} : vector<2x96xf32> to vector<2x64xf32>
    %175 = arith.addf %173, %174 : vector<2x64xf32>
    %176 = arith.negf %175 : vector<2x64xf32>
    %177 = math.exp %176 : vector<2x64xf32>
    %cst_46 = arith.constant 1.000000e+00 : f32
    %178 = vector.broadcast %cst_46 : f32 to vector<2x64xf32>
    %179 = arith.addf %178, %177 : vector<2x64xf32>
    %180 = arith.divf %178, %179 : vector<2x64xf32>
    %181 = vector.extract_strided_slice %180 {offsets = [0, 0], sizes = [2, 32], strides = [1, 1]} : vector<2x64xf32> to vector<2x32xf32>
    %182 = vector.extract_strided_slice %180 {offsets = [0, 32], sizes = [2, 32], strides = [1, 1]} : vector<2x64xf32> to vector<2x32xf32>
    %183 = vector.extract_strided_slice %171 {offsets = [0, 64], sizes = [2, 32], strides = [1, 1]} : vector<2x96xf32> to vector<2x32xf32>
    %184 = vector.extract_strided_slice %172 {offsets = [0, 64], sizes = [2, 32], strides = [1, 1]} : vector<2x96xf32> to vector<2x32xf32>
    %185 = vector.broadcast %11 : vector<1x32xf32> to vector<2x32xf32>
    %186 = arith.addf %184, %185 : vector<2x32xf32>
    %187 = arith.mulf %181, %186 : vector<2x32xf32>
    %188 = arith.addf %183, %187 : vector<2x32xf32>
    %189 = math.tanh %188 : vector<2x32xf32>
    %cst_47 = arith.constant 1.000000e+00 : f32
    %190 = vector.broadcast %cst_47 : f32 to vector<2x32xf32>
    %191 = arith.subf %190, %182 : vector<2x32xf32>
    %192 = arith.mulf %191, %189 : vector<2x32xf32>
    %193 = arith.mulf %182, %170 : vector<2x32xf32>
    %194 = arith.addf %192, %193 : vector<2x32xf32>
    %195 = vector.extract_strided_slice %22 {offsets = [14, 0], sizes = [2, 96], strides = [1, 1]} : vector<16x96xf32> to vector<2x96xf32>
    %cst_48 = arith.constant dense<0.000000e+00> : vector<2x96xf32>
    %196 = tpu.matmul %194, %4, %cst_48 {dimension_numbers = #tpu.dot_dimension_numbers<[1], [0], [0], [1], [0, 0, 1, 1], [], []>} : vector<2x32xf32>, vector<32x96xf32>, vector<2x96xf32> -> vector<2x96xf32>
    %197 = vector.extract_strided_slice %195 {offsets = [0, 0], sizes = [2, 64], strides = [1, 1]} : vector<2x96xf32> to vector<2x64xf32>
    %198 = vector.extract_strided_slice %196 {offsets = [0, 0], sizes = [2, 64], strides = [1, 1]} : vector<2x96xf32> to vector<2x64xf32>
    %199 = arith.addf %197, %198 : vector<2x64xf32>
    %200 = arith.negf %199 : vector<2x64xf32>
    %201 = math.exp %200 : vector<2x64xf32>
    %cst_49 = arith.constant 1.000000e+00 : f32
    %202 = vector.broadcast %cst_49 : f32 to vector<2x64xf32>
    %203 = arith.addf %202, %201 : vector<2x64xf32>
    %204 = arith.divf %202, %203 : vector<2x64xf32>
    %205 = vector.extract_strided_slice %204 {offsets = [0, 0], sizes = [2, 32], strides = [1, 1]} : vector<2x64xf32> to vector<2x32xf32>
    %206 = vector.extract_strided_slice %204 {offsets = [0, 32], sizes = [2, 32], strides = [1, 1]} : vector<2x64xf32> to vector<2x32xf32>
    %207 = vector.extract_strided_slice %195 {offsets = [0, 64], sizes = [2, 32], strides = [1, 1]} : vector<2x96xf32> to vector<2x32xf32>
    %208 = vector.extract_strided_slice %196 {offsets = [0, 64], sizes = [2, 32], strides = [1, 1]} : vector<2x96xf32> to vector<2x32xf32>
    %209 = vector.broadcast %11 : vector<1x32xf32> to vector<2x32xf32>
    %210 = arith.addf %208, %209 : vector<2x32xf32>
    %211 = arith.mulf %205, %210 : vector<2x32xf32>
    %212 = arith.addf %207, %211 : vector<2x32xf32>
    %213 = math.tanh %212 : vector<2x32xf32>
    %cst_50 = arith.constant 1.000000e+00 : f32
    %214 = vector.broadcast %cst_50 : f32 to vector<2x32xf32>
    %215 = arith.subf %214, %206 : vector<2x32xf32>
    %216 = arith.mulf %215, %213 : vector<2x32xf32>
    %217 = arith.mulf %206, %194 : vector<2x32xf32>
    %218 = arith.addf %216, %217 : vector<2x32xf32>
    %219 = vector.extract_strided_slice %1 {offsets = [0, 0], sizes = [2, 4], strides = [1, 1]} : vector<16x4xf32> to vector<2x4xf32>
    %220 = vector.extract_strided_slice %25 {offsets = [0, 0], sizes = [2, 128], strides = [1, 1]} : vector<16x128xf32> to vector<2x128xf32>
    %cst_51 = arith.constant dense<0.000000e+00> : vector<2x128xf32>
    %221 = tpu.matmul %218, %6, %cst_51 {dimension_numbers = #tpu.dot_dimension_numbers<[1], [0], [0], [1], [0, 0, 1, 1], [], []>} : vector<2x32xf32>, vector<32x128xf32>, vector<2x128xf32> -> vector<2x128xf32>
    %222 = arith.addf %220, %221 : vector<2x128xf32>
    %223 = vector.extract_strided_slice %222 {offsets = [0, 0], sizes = [2, 64], strides = [1, 1]} : vector<2x128xf32> to vector<2x64xf32>
    %224 = arith.negf %223 : vector<2x64xf32>
    %225 = math.exp %224 : vector<2x64xf32>
    %cst_52 = arith.constant 1.000000e+00 : f32
    %226 = vector.broadcast %cst_52 : f32 to vector<2x64xf32>
    %227 = arith.addf %226, %225 : vector<2x64xf32>
    %228 = arith.divf %226, %227 : vector<2x64xf32>
    %229 = vector.extract_strided_slice %228 {offsets = [0, 0], sizes = [2, 32], strides = [1, 1]} : vector<2x64xf32> to vector<2x32xf32>
    %230 = vector.extract_strided_slice %228 {offsets = [0, 32], sizes = [2, 32], strides = [1, 1]} : vector<2x64xf32> to vector<2x32xf32>
    %231 = vector.extract_strided_slice %222 {offsets = [0, 64], sizes = [2, 32], strides = [1, 1]} : vector<2x128xf32> to vector<2x32xf32>
    %232 = vector.extract_strided_slice %222 {offsets = [0, 96], sizes = [2, 32], strides = [1, 1]} : vector<2x128xf32> to vector<2x32xf32>
    %233 = arith.mulf %229, %232 : vector<2x32xf32>
    %234 = arith.addf %231, %233 : vector<2x32xf32>
    %235 = math.tanh %234 : vector<2x32xf32>
    %cst_53 = arith.constant 1.000000e+00 : f32
    %236 = vector.broadcast %cst_53 : f32 to vector<2x32xf32>
    %237 = arith.subf %236, %230 : vector<2x32xf32>
    %238 = arith.mulf %237, %235 : vector<2x32xf32>
    %239 = arith.mulf %230, %218 : vector<2x32xf32>
    %240 = arith.addf %238, %239 : vector<2x32xf32>
    %cst_54 = arith.constant dense<0.000000e+00> : vector<2x8xf32>
    %241 = tpu.matmul %240, %7, %cst_54 {dimension_numbers = #tpu.dot_dimension_numbers<[1], [0], [0], [1], [0, 0, 1, 1], [], []>} : vector<2x32xf32>, vector<32x8xf32>, vector<2x8xf32> -> vector<2x8xf32>
    %242 = vector.broadcast %13 : vector<1x8xf32> to vector<2x8xf32>
    %243 = arith.addf %241, %242 : vector<2x8xf32>
    %cst_55 = arith.constant 0.000000e+00 : f32
    %244 = vector.broadcast %cst_55 : f32 to vector<2x8xf32>
    %245 = arith.maximumf %243, %244 : vector<2x8xf32>
    %cst_56 = arith.constant dense<0.000000e+00> : vector<2x4xf32>
    %246 = tpu.matmul %245, %8, %cst_56 {dimension_numbers = #tpu.dot_dimension_numbers<[1], [0], [0], [1], [0, 0, 1, 1], [], []>} : vector<2x8xf32>, vector<8x4xf32>, vector<2x4xf32> -> vector<2x4xf32>
    %247 = vector.broadcast %14 : vector<1x4xf32> to vector<2x4xf32>
    %248 = arith.addf %246, %247 : vector<2x4xf32>
    %249 = arith.addf %248, %219 : vector<2x4xf32>
    %cst_57 = arith.constant dense<0.000000e+00> : vector<2x128xf32>
    %250 = tpu.matmul %249, %5, %cst_57 {dimension_numbers = #tpu.dot_dimension_numbers<[1], [0], [0], [1], [0, 0, 1, 1], [], []>} : vector<2x4xf32>, vector<4x128xf32>, vector<2x128xf32> -> vector<2x128xf32>
    %251 = vector.broadcast %12 : vector<1x128xf32> to vector<2x128xf32>
    %252 = arith.addf %250, %251 : vector<2x128xf32>
    %cst_58 = arith.constant dense<0.000000e+00> : vector<2x128xf32>
    %253 = tpu.matmul %240, %6, %cst_58 {dimension_numbers = #tpu.dot_dimension_numbers<[1], [0], [0], [1], [0, 0, 1, 1], [], []>} : vector<2x32xf32>, vector<32x128xf32>, vector<2x128xf32> -> vector<2x128xf32>
    %254 = arith.addf %252, %253 : vector<2x128xf32>
    %255 = vector.extract_strided_slice %254 {offsets = [0, 0], sizes = [2, 64], strides = [1, 1]} : vector<2x128xf32> to vector<2x64xf32>
    %256 = arith.negf %255 : vector<2x64xf32>
    %257 = math.exp %256 : vector<2x64xf32>
    %cst_59 = arith.constant 1.000000e+00 : f32
    %258 = vector.broadcast %cst_59 : f32 to vector<2x64xf32>
    %259 = arith.addf %258, %257 : vector<2x64xf32>
    %260 = arith.divf %258, %259 : vector<2x64xf32>
    %261 = vector.extract_strided_slice %260 {offsets = [0, 0], sizes = [2, 32], strides = [1, 1]} : vector<2x64xf32> to vector<2x32xf32>
    %262 = vector.extract_strided_slice %260 {offsets = [0, 32], sizes = [2, 32], strides = [1, 1]} : vector<2x64xf32> to vector<2x32xf32>
    %263 = vector.extract_strided_slice %254 {offsets = [0, 64], sizes = [2, 32], strides = [1, 1]} : vector<2x128xf32> to vector<2x32xf32>
    %264 = vector.extract_strided_slice %254 {offsets = [0, 96], sizes = [2, 32], strides = [1, 1]} : vector<2x128xf32> to vector<2x32xf32>
    %265 = arith.mulf %261, %264 : vector<2x32xf32>
    %266 = arith.addf %263, %265 : vector<2x32xf32>
    %267 = math.tanh %266 : vector<2x32xf32>
    %cst_60 = arith.constant 1.000000e+00 : f32
    %268 = vector.broadcast %cst_60 : f32 to vector<2x32xf32>
    %269 = arith.subf %268, %262 : vector<2x32xf32>
    %270 = arith.mulf %269, %267 : vector<2x32xf32>
    %271 = arith.mulf %262, %240 : vector<2x32xf32>
    %272 = arith.addf %270, %271 : vector<2x32xf32>
    %cst_61 = arith.constant dense<0.000000e+00> : vector<2x8xf32>
    %273 = tpu.matmul %272, %7, %cst_61 {dimension_numbers = #tpu.dot_dimension_numbers<[1], [0], [0], [1], [0, 0, 1, 1], [], []>} : vector<2x32xf32>, vector<32x8xf32>, vector<2x8xf32> -> vector<2x8xf32>
    %274 = vector.broadcast %13 : vector<1x8xf32> to vector<2x8xf32>
    %275 = arith.addf %273, %274 : vector<2x8xf32>
    %cst_62 = arith.constant 0.000000e+00 : f32
    %276 = vector.broadcast %cst_62 : f32 to vector<2x8xf32>
    %277 = arith.maximumf %275, %276 : vector<2x8xf32>
    %cst_63 = arith.constant dense<0.000000e+00> : vector<2x4xf32>
    %278 = tpu.matmul %277, %8, %cst_63 {dimension_numbers = #tpu.dot_dimension_numbers<[1], [0], [0], [1], [0, 0, 1, 1], [], []>} : vector<2x8xf32>, vector<8x4xf32>, vector<2x4xf32> -> vector<2x4xf32>
    %279 = vector.broadcast %14 : vector<1x4xf32> to vector<2x4xf32>
    %280 = arith.addf %278, %279 : vector<2x4xf32>
    %281 = arith.addf %280, %249 : vector<2x4xf32>
    %cst_64 = arith.constant dense<0.000000e+00> : vector<2x128xf32>
    %282 = tpu.matmul %281, %5, %cst_64 {dimension_numbers = #tpu.dot_dimension_numbers<[1], [0], [0], [1], [0, 0, 1, 1], [], []>} : vector<2x4xf32>, vector<4x128xf32>, vector<2x128xf32> -> vector<2x128xf32>
    %283 = vector.broadcast %12 : vector<1x128xf32> to vector<2x128xf32>
    %284 = arith.addf %282, %283 : vector<2x128xf32>
    %cst_65 = arith.constant dense<0.000000e+00> : vector<2x128xf32>
    %285 = tpu.matmul %272, %6, %cst_65 {dimension_numbers = #tpu.dot_dimension_numbers<[1], [0], [0], [1], [0, 0, 1, 1], [], []>} : vector<2x32xf32>, vector<32x128xf32>, vector<2x128xf32> -> vector<2x128xf32>
    %286 = arith.addf %284, %285 : vector<2x128xf32>
    %287 = vector.extract_strided_slice %286 {offsets = [0, 0], sizes = [2, 64], strides = [1, 1]} : vector<2x128xf32> to vector<2x64xf32>
    %288 = arith.negf %287 : vector<2x64xf32>
    %289 = math.exp %288 : vector<2x64xf32>
    %cst_66 = arith.constant 1.000000e+00 : f32
    %290 = vector.broadcast %cst_66 : f32 to vector<2x64xf32>
    %291 = arith.addf %290, %289 : vector<2x64xf32>
    %292 = arith.divf %290, %291 : vector<2x64xf32>
    %293 = vector.extract_strided_slice %292 {offsets = [0, 0], sizes = [2, 32], strides = [1, 1]} : vector<2x64xf32> to vector<2x32xf32>
    %294 = vector.extract_strided_slice %292 {offsets = [0, 32], sizes = [2, 32], strides = [1, 1]} : vector<2x64xf32> to vector<2x32xf32>
    %295 = vector.extract_strided_slice %286 {offsets = [0, 64], sizes = [2, 32], strides = [1, 1]} : vector<2x128xf32> to vector<2x32xf32>
    %296 = vector.extract_strided_slice %286 {offsets = [0, 96], sizes = [2, 32], strides = [1, 1]} : vector<2x128xf32> to vector<2x32xf32>
    %297 = arith.mulf %293, %296 : vector<2x32xf32>
    %298 = arith.addf %295, %297 : vector<2x32xf32>
    %299 = math.tanh %298 : vector<2x32xf32>
    %cst_67 = arith.constant 1.000000e+00 : f32
    %300 = vector.broadcast %cst_67 : f32 to vector<2x32xf32>
    %301 = arith.subf %300, %294 : vector<2x32xf32>
    %302 = arith.mulf %301, %299 : vector<2x32xf32>
    %303 = arith.mulf %294, %272 : vector<2x32xf32>
    %304 = arith.addf %302, %303 : vector<2x32xf32>
    %cst_68 = arith.constant dense<0.000000e+00> : vector<2x8xf32>
    %305 = tpu.matmul %304, %7, %cst_68 {dimension_numbers = #tpu.dot_dimension_numbers<[1], [0], [0], [1], [0, 0, 1, 1], [], []>} : vector<2x32xf32>, vector<32x8xf32>, vector<2x8xf32> -> vector<2x8xf32>
    %306 = vector.broadcast %13 : vector<1x8xf32> to vector<2x8xf32>
    %307 = arith.addf %305, %306 : vector<2x8xf32>
    %cst_69 = arith.constant 0.000000e+00 : f32
    %308 = vector.broadcast %cst_69 : f32 to vector<2x8xf32>
    %309 = arith.maximumf %307, %308 : vector<2x8xf32>
    %cst_70 = arith.constant dense<0.000000e+00> : vector<2x4xf32>
    %310 = tpu.matmul %309, %8, %cst_70 {dimension_numbers = #tpu.dot_dimension_numbers<[1], [0], [0], [1], [0, 0, 1, 1], [], []>} : vector<2x8xf32>, vector<8x4xf32>, vector<2x4xf32> -> vector<2x4xf32>
    %311 = vector.broadcast %14 : vector<1x4xf32> to vector<2x4xf32>
    %312 = arith.addf %310, %311 : vector<2x4xf32>
    %313 = arith.addf %312, %281 : vector<2x4xf32>
    %cst_71 = arith.constant dense<0.000000e+00> : vector<2x128xf32>
    %314 = tpu.matmul %313, %5, %cst_71 {dimension_numbers = #tpu.dot_dimension_numbers<[1], [0], [0], [1], [0, 0, 1, 1], [], []>} : vector<2x4xf32>, vector<4x128xf32>, vector<2x128xf32> -> vector<2x128xf32>
    %315 = vector.broadcast %12 : vector<1x128xf32> to vector<2x128xf32>
    %316 = arith.addf %314, %315 : vector<2x128xf32>
    %cst_72 = arith.constant dense<0.000000e+00> : vector<2x128xf32>
    %317 = tpu.matmul %304, %6, %cst_72 {dimension_numbers = #tpu.dot_dimension_numbers<[1], [0], [0], [1], [0, 0, 1, 1], [], []>} : vector<2x32xf32>, vector<32x128xf32>, vector<2x128xf32> -> vector<2x128xf32>
    %318 = arith.addf %316, %317 : vector<2x128xf32>
    %319 = vector.extract_strided_slice %318 {offsets = [0, 0], sizes = [2, 64], strides = [1, 1]} : vector<2x128xf32> to vector<2x64xf32>
    %320 = arith.negf %319 : vector<2x64xf32>
    %321 = math.exp %320 : vector<2x64xf32>
    %cst_73 = arith.constant 1.000000e+00 : f32
    %322 = vector.broadcast %cst_73 : f32 to vector<2x64xf32>
    %323 = arith.addf %322, %321 : vector<2x64xf32>
    %324 = arith.divf %322, %323 : vector<2x64xf32>
    %325 = vector.extract_strided_slice %324 {offsets = [0, 0], sizes = [2, 32], strides = [1, 1]} : vector<2x64xf32> to vector<2x32xf32>
    %326 = vector.extract_strided_slice %324 {offsets = [0, 32], sizes = [2, 32], strides = [1, 1]} : vector<2x64xf32> to vector<2x32xf32>
    %327 = vector.extract_strided_slice %318 {offsets = [0, 64], sizes = [2, 32], strides = [1, 1]} : vector<2x128xf32> to vector<2x32xf32>
    %328 = vector.extract_strided_slice %318 {offsets = [0, 96], sizes = [2, 32], strides = [1, 1]} : vector<2x128xf32> to vector<2x32xf32>
    %329 = arith.mulf %325, %328 : vector<2x32xf32>
    %330 = arith.addf %327, %329 : vector<2x32xf32>
    %331 = math.tanh %330 : vector<2x32xf32>
    %cst_74 = arith.constant 1.000000e+00 : f32
    %332 = vector.broadcast %cst_74 : f32 to vector<2x32xf32>
    %333 = arith.subf %332, %326 : vector<2x32xf32>
    %334 = arith.mulf %333, %331 : vector<2x32xf32>
    %335 = arith.mulf %326, %304 : vector<2x32xf32>
    %336 = arith.addf %334, %335 : vector<2x32xf32>
    %cst_75 = arith.constant dense<0.000000e+00> : vector<2x8xf32>
    %337 = tpu.matmul %336, %7, %cst_75 {dimension_numbers = #tpu.dot_dimension_numbers<[1], [0], [0], [1], [0, 0, 1, 1], [], []>} : vector<2x32xf32>, vector<32x8xf32>, vector<2x8xf32> -> vector<2x8xf32>
    %338 = vector.broadcast %13 : vector<1x8xf32> to vector<2x8xf32>
    %339 = arith.addf %337, %338 : vector<2x8xf32>
    %cst_76 = arith.constant 0.000000e+00 : f32
    %340 = vector.broadcast %cst_76 : f32 to vector<2x8xf32>
    %341 = arith.maximumf %339, %340 : vector<2x8xf32>
    %cst_77 = arith.constant dense<0.000000e+00> : vector<2x4xf32>
    %342 = tpu.matmul %341, %8, %cst_77 {dimension_numbers = #tpu.dot_dimension_numbers<[1], [0], [0], [1], [0, 0, 1, 1], [], []>} : vector<2x8xf32>, vector<8x4xf32>, vector<2x4xf32> -> vector<2x4xf32>
    %343 = vector.broadcast %14 : vector<1x4xf32> to vector<2x4xf32>
    %344 = arith.addf %342, %343 : vector<2x4xf32>
    %345 = arith.addf %344, %313 : vector<2x4xf32>
    %cst_78 = arith.constant dense<0.000000e+00> : vector<2x128xf32>
    %346 = tpu.matmul %345, %5, %cst_78 {dimension_numbers = #tpu.dot_dimension_numbers<[1], [0], [0], [1], [0, 0, 1, 1], [], []>} : vector<2x4xf32>, vector<4x128xf32>, vector<2x128xf32> -> vector<2x128xf32>
    %347 = vector.broadcast %12 : vector<1x128xf32> to vector<2x128xf32>
    %348 = arith.addf %346, %347 : vector<2x128xf32>
    %cst_79 = arith.constant dense<0.000000e+00> : vector<2x128xf32>
    %349 = tpu.matmul %336, %6, %cst_79 {dimension_numbers = #tpu.dot_dimension_numbers<[1], [0], [0], [1], [0, 0, 1, 1], [], []>} : vector<2x32xf32>, vector<32x128xf32>, vector<2x128xf32> -> vector<2x128xf32>
    %350 = arith.addf %348, %349 : vector<2x128xf32>
    %351 = vector.extract_strided_slice %350 {offsets = [0, 0], sizes = [2, 64], strides = [1, 1]} : vector<2x128xf32> to vector<2x64xf32>
    %352 = arith.negf %351 : vector<2x64xf32>
    %353 = math.exp %352 : vector<2x64xf32>
    %cst_80 = arith.constant 1.000000e+00 : f32
    %354 = vector.broadcast %cst_80 : f32 to vector<2x64xf32>
    %355 = arith.addf %354, %353 : vector<2x64xf32>
    %356 = arith.divf %354, %355 : vector<2x64xf32>
    %357 = vector.extract_strided_slice %356 {offsets = [0, 0], sizes = [2, 32], strides = [1, 1]} : vector<2x64xf32> to vector<2x32xf32>
    %358 = vector.extract_strided_slice %356 {offsets = [0, 32], sizes = [2, 32], strides = [1, 1]} : vector<2x64xf32> to vector<2x32xf32>
    %359 = vector.extract_strided_slice %350 {offsets = [0, 64], sizes = [2, 32], strides = [1, 1]} : vector<2x128xf32> to vector<2x32xf32>
    %360 = vector.extract_strided_slice %350 {offsets = [0, 96], sizes = [2, 32], strides = [1, 1]} : vector<2x128xf32> to vector<2x32xf32>
    %361 = arith.mulf %357, %360 : vector<2x32xf32>
    %362 = arith.addf %359, %361 : vector<2x32xf32>
    %363 = math.tanh %362 : vector<2x32xf32>
    %cst_81 = arith.constant 1.000000e+00 : f32
    %364 = vector.broadcast %cst_81 : f32 to vector<2x32xf32>
    %365 = arith.subf %364, %358 : vector<2x32xf32>
    %366 = arith.mulf %365, %363 : vector<2x32xf32>
    %367 = arith.mulf %358, %336 : vector<2x32xf32>
    %368 = arith.addf %366, %367 : vector<2x32xf32>
    %cst_82 = arith.constant dense<0.000000e+00> : vector<2x8xf32>
    %369 = tpu.matmul %368, %7, %cst_82 {dimension_numbers = #tpu.dot_dimension_numbers<[1], [0], [0], [1], [0, 0, 1, 1], [], []>} : vector<2x32xf32>, vector<32x8xf32>, vector<2x8xf32> -> vector<2x8xf32>
    %370 = vector.broadcast %13 : vector<1x8xf32> to vector<2x8xf32>
    %371 = arith.addf %369, %370 : vector<2x8xf32>
    %cst_83 = arith.constant 0.000000e+00 : f32
    %372 = vector.broadcast %cst_83 : f32 to vector<2x8xf32>
    %373 = arith.maximumf %371, %372 : vector<2x8xf32>
    %cst_84 = arith.constant dense<0.000000e+00> : vector<2x4xf32>
    %374 = tpu.matmul %373, %8, %cst_84 {dimension_numbers = #tpu.dot_dimension_numbers<[1], [0], [0], [1], [0, 0, 1, 1], [], []>} : vector<2x8xf32>, vector<8x4xf32>, vector<2x4xf32> -> vector<2x4xf32>
    %375 = vector.broadcast %14 : vector<1x4xf32> to vector<2x4xf32>
    %376 = arith.addf %374, %375 : vector<2x4xf32>
    %377 = arith.addf %376, %345 : vector<2x4xf32>
    %378 = vector.extract_strided_slice %25 {offsets = [10, 0], sizes = [2, 128], strides = [1, 1]} : vector<16x128xf32> to vector<2x128xf32>
    %cst_85 = arith.constant dense<0.000000e+00> : vector<2x128xf32>
    %379 = tpu.matmul %368, %6, %cst_85 {dimension_numbers = #tpu.dot_dimension_numbers<[1], [0], [0], [1], [0, 0, 1, 1], [], []>} : vector<2x32xf32>, vector<32x128xf32>, vector<2x128xf32> -> vector<2x128xf32>
    %380 = arith.addf %378, %379 : vector<2x128xf32>
    %381 = vector.extract_strided_slice %380 {offsets = [0, 0], sizes = [2, 64], strides = [1, 1]} : vector<2x128xf32> to vector<2x64xf32>
    %382 = arith.negf %381 : vector<2x64xf32>
    %383 = math.exp %382 : vector<2x64xf32>
    %cst_86 = arith.constant 1.000000e+00 : f32
    %384 = vector.broadcast %cst_86 : f32 to vector<2x64xf32>
    %385 = arith.addf %384, %383 : vector<2x64xf32>
    %386 = arith.divf %384, %385 : vector<2x64xf32>
    %387 = vector.extract_strided_slice %386 {offsets = [0, 0], sizes = [2, 32], strides = [1, 1]} : vector<2x64xf32> to vector<2x32xf32>
    %388 = vector.extract_strided_slice %386 {offsets = [0, 32], sizes = [2, 32], strides = [1, 1]} : vector<2x64xf32> to vector<2x32xf32>
    %389 = vector.extract_strided_slice %380 {offsets = [0, 64], sizes = [2, 32], strides = [1, 1]} : vector<2x128xf32> to vector<2x32xf32>
    %390 = vector.extract_strided_slice %380 {offsets = [0, 96], sizes = [2, 32], strides = [1, 1]} : vector<2x128xf32> to vector<2x32xf32>
    %391 = arith.mulf %387, %390 : vector<2x32xf32>
    %392 = arith.addf %389, %391 : vector<2x32xf32>
    %393 = math.tanh %392 : vector<2x32xf32>
    %cst_87 = arith.constant 1.000000e+00 : f32
    %394 = vector.broadcast %cst_87 : f32 to vector<2x32xf32>
    %395 = arith.subf %394, %388 : vector<2x32xf32>
    %396 = arith.mulf %395, %393 : vector<2x32xf32>
    %397 = arith.mulf %388, %368 : vector<2x32xf32>
    %398 = arith.addf %396, %397 : vector<2x32xf32>
    %cst_88 = arith.constant dense<0.000000e+00> : vector<2x8xf32>
    %399 = tpu.matmul %398, %7, %cst_88 {dimension_numbers = #tpu.dot_dimension_numbers<[1], [0], [0], [1], [0, 0, 1, 1], [], []>} : vector<2x32xf32>, vector<32x8xf32>, vector<2x8xf32> -> vector<2x8xf32>
    %400 = vector.broadcast %13 : vector<1x8xf32> to vector<2x8xf32>
    %401 = arith.addf %399, %400 : vector<2x8xf32>
    %cst_89 = arith.constant 0.000000e+00 : f32
    %402 = vector.broadcast %cst_89 : f32 to vector<2x8xf32>
    %403 = arith.maximumf %401, %402 : vector<2x8xf32>
    %cst_90 = arith.constant dense<0.000000e+00> : vector<2x4xf32>
    %404 = tpu.matmul %403, %8, %cst_90 {dimension_numbers = #tpu.dot_dimension_numbers<[1], [0], [0], [1], [0, 0, 1, 1], [], []>} : vector<2x8xf32>, vector<8x4xf32>, vector<2x4xf32> -> vector<2x4xf32>
    %405 = vector.broadcast %14 : vector<1x4xf32> to vector<2x4xf32>
    %406 = arith.addf %404, %405 : vector<2x4xf32>
    %407 = arith.addf %406, %377 : vector<2x4xf32>
    %cst_91 = arith.constant dense<0.000000e+00> : vector<2x128xf32>
    %408 = tpu.matmul %407, %5, %cst_91 {dimension_numbers = #tpu.dot_dimension_numbers<[1], [0], [0], [1], [0, 0, 1, 1], [], []>} : vector<2x4xf32>, vector<4x128xf32>, vector<2x128xf32> -> vector<2x128xf32>
    %409 = vector.broadcast %12 : vector<1x128xf32> to vector<2x128xf32>
    %410 = arith.addf %408, %409 : vector<2x128xf32>
    %cst_92 = arith.constant dense<0.000000e+00> : vector<2x128xf32>
    %411 = tpu.matmul %398, %6, %cst_92 {dimension_numbers = #tpu.dot_dimension_numbers<[1], [0], [0], [1], [0, 0, 1, 1], [], []>} : vector<2x32xf32>, vector<32x128xf32>, vector<2x128xf32> -> vector<2x128xf32>
    %412 = arith.addf %410, %411 : vector<2x128xf32>
    %413 = vector.extract_strided_slice %412 {offsets = [0, 0], sizes = [2, 64], strides = [1, 1]} : vector<2x128xf32> to vector<2x64xf32>
    %414 = arith.negf %413 : vector<2x64xf32>
    %415 = math.exp %414 : vector<2x64xf32>
    %cst_93 = arith.constant 1.000000e+00 : f32
    %416 = vector.broadcast %cst_93 : f32 to vector<2x64xf32>
    %417 = arith.addf %416, %415 : vector<2x64xf32>
    %418 = arith.divf %416, %417 : vector<2x64xf32>
    %419 = vector.extract_strided_slice %418 {offsets = [0, 0], sizes = [2, 32], strides = [1, 1]} : vector<2x64xf32> to vector<2x32xf32>
    %420 = vector.extract_strided_slice %418 {offsets = [0, 32], sizes = [2, 32], strides = [1, 1]} : vector<2x64xf32> to vector<2x32xf32>
    %421 = vector.extract_strided_slice %412 {offsets = [0, 64], sizes = [2, 32], strides = [1, 1]} : vector<2x128xf32> to vector<2x32xf32>
    %422 = vector.extract_strided_slice %412 {offsets = [0, 96], sizes = [2, 32], strides = [1, 1]} : vector<2x128xf32> to vector<2x32xf32>
    %423 = arith.mulf %419, %422 : vector<2x32xf32>
    %424 = arith.addf %421, %423 : vector<2x32xf32>
    %425 = math.tanh %424 : vector<2x32xf32>
    %cst_94 = arith.constant 1.000000e+00 : f32
    %426 = vector.broadcast %cst_94 : f32 to vector<2x32xf32>
    %427 = arith.subf %426, %420 : vector<2x32xf32>
    %428 = arith.mulf %427, %425 : vector<2x32xf32>
    %429 = arith.mulf %420, %398 : vector<2x32xf32>
    %430 = arith.addf %428, %429 : vector<2x32xf32>
    %cst_95 = arith.constant dense<0.000000e+00> : vector<2x8xf32>
    %431 = tpu.matmul %430, %7, %cst_95 {dimension_numbers = #tpu.dot_dimension_numbers<[1], [0], [0], [1], [0, 0, 1, 1], [], []>} : vector<2x32xf32>, vector<32x8xf32>, vector<2x8xf32> -> vector<2x8xf32>
    %432 = vector.broadcast %13 : vector<1x8xf32> to vector<2x8xf32>
    %433 = arith.addf %431, %432 : vector<2x8xf32>
    %cst_96 = arith.constant 0.000000e+00 : f32
    %434 = vector.broadcast %cst_96 : f32 to vector<2x8xf32>
    %435 = arith.maximumf %433, %434 : vector<2x8xf32>
    %cst_97 = arith.constant dense<0.000000e+00> : vector<2x4xf32>
    %436 = tpu.matmul %435, %8, %cst_97 {dimension_numbers = #tpu.dot_dimension_numbers<[1], [0], [0], [1], [0, 0, 1, 1], [], []>} : vector<2x8xf32>, vector<8x4xf32>, vector<2x4xf32> -> vector<2x4xf32>
    %437 = vector.broadcast %14 : vector<1x4xf32> to vector<2x4xf32>
    %438 = arith.addf %436, %437 : vector<2x4xf32>
    %439 = arith.addf %438, %407 : vector<2x4xf32>
    %440 = vector.extract_strided_slice %25 {offsets = [14, 0], sizes = [2, 128], strides = [1, 1]} : vector<16x128xf32> to vector<2x128xf32>
    %cst_98 = arith.constant dense<0.000000e+00> : vector<2x128xf32>
    %441 = tpu.matmul %430, %6, %cst_98 {dimension_numbers = #tpu.dot_dimension_numbers<[1], [0], [0], [1], [0, 0, 1, 1], [], []>} : vector<2x32xf32>, vector<32x128xf32>, vector<2x128xf32> -> vector<2x128xf32>
    %442 = arith.addf %440, %441 : vector<2x128xf32>
    %443 = vector.extract_strided_slice %442 {offsets = [0, 0], sizes = [2, 64], strides = [1, 1]} : vector<2x128xf32> to vector<2x64xf32>
    %444 = arith.negf %443 : vector<2x64xf32>
    %445 = math.exp %444 : vector<2x64xf32>
    %cst_99 = arith.constant 1.000000e+00 : f32
    %446 = vector.broadcast %cst_99 : f32 to vector<2x64xf32>
    %447 = arith.addf %446, %445 : vector<2x64xf32>
    %448 = arith.divf %446, %447 : vector<2x64xf32>
    %449 = vector.extract_strided_slice %448 {offsets = [0, 0], sizes = [2, 32], strides = [1, 1]} : vector<2x64xf32> to vector<2x32xf32>
    %450 = vector.extract_strided_slice %448 {offsets = [0, 32], sizes = [2, 32], strides = [1, 1]} : vector<2x64xf32> to vector<2x32xf32>
    %451 = vector.extract_strided_slice %442 {offsets = [0, 64], sizes = [2, 32], strides = [1, 1]} : vector<2x128xf32> to vector<2x32xf32>
    %452 = vector.extract_strided_slice %442 {offsets = [0, 96], sizes = [2, 32], strides = [1, 1]} : vector<2x128xf32> to vector<2x32xf32>
    %453 = arith.mulf %449, %452 : vector<2x32xf32>
    %454 = arith.addf %451, %453 : vector<2x32xf32>
    %455 = math.tanh %454 : vector<2x32xf32>
    %cst_100 = arith.constant 1.000000e+00 : f32
    %456 = vector.broadcast %cst_100 : f32 to vector<2x32xf32>
    %457 = arith.subf %456, %450 : vector<2x32xf32>
    %458 = arith.mulf %457, %455 : vector<2x32xf32>
    %459 = arith.mulf %450, %430 : vector<2x32xf32>
    %460 = arith.addf %458, %459 : vector<2x32xf32>
    %cst_101 = arith.constant dense<0.000000e+00> : vector<2x8xf32>
    %461 = tpu.matmul %460, %7, %cst_101 {dimension_numbers = #tpu.dot_dimension_numbers<[1], [0], [0], [1], [0, 0, 1, 1], [], []>} : vector<2x32xf32>, vector<32x8xf32>, vector<2x8xf32> -> vector<2x8xf32>
    %462 = vector.broadcast %13 : vector<1x8xf32> to vector<2x8xf32>
    %463 = arith.addf %461, %462 : vector<2x8xf32>
    %cst_102 = arith.constant 0.000000e+00 : f32
    %464 = vector.broadcast %cst_102 : f32 to vector<2x8xf32>
    %465 = arith.maximumf %463, %464 : vector<2x8xf32>
    %cst_103 = arith.constant dense<0.000000e+00> : vector<2x4xf32>
    %466 = tpu.matmul %465, %8, %cst_103 {dimension_numbers = #tpu.dot_dimension_numbers<[1], [0], [0], [1], [0, 0, 1, 1], [], []>} : vector<2x8xf32>, vector<8x4xf32>, vector<2x4xf32> -> vector<2x4xf32>
    %467 = vector.broadcast %14 : vector<1x4xf32> to vector<2x4xf32>
    %468 = arith.addf %466, %467 : vector<2x4xf32>
    %469 = arith.addf %468, %439 : vector<2x4xf32>
    %470 = tpu.concatenate %249, %281, %313, %345, %377, %407, %439, %469 in 0 : vector<2x4xf32>, vector<2x4xf32>, vector<2x4xf32>, vector<2x4xf32>, vector<2x4xf32>, vector<2x4xf32>, vector<2x4xf32>, vector<2x4xf32> -> vector<16x4xf32>
    %c0_104 = arith.constant 0 : index
    %c0_105 = arith.constant 0 : index
    %c0_106 = arith.constant 0 : index
    %471 = vector.load %arg10[%c0_104, %c0_105, %c0_106] : memref<1x16x4xf32, #tpu.memory_space<vmem>>, vector<1x16x4xf32>
    %472 = vector.shape_cast %471 : vector<1x16x4xf32> to vector<16x4xf32>
    %473 = vector.shape_cast %470 : vector<16x4xf32> to vector<1x16x4xf32>
    tpu.vector_store %arg10[%c0_104, %c0_105, %c0_106], %473 {strides = array<i32>} : memref<1x16x4xf32, #tpu.memory_space<vmem>>, vector<1x16x4xf32>,
    return
  }
  func.func @transform_0(%arg0: i32) -> (i32, i32, i32) {
    %c0_i32 = arith.constant 0 : i32
    %c0_i32_0 = arith.constant 0 : i32
    %c0_i32_1 = arith.constant 0 : i32
    return %arg0, %c0_i32, %c0_i32_0 : i32, i32, i32
  }
  func.func @transform_1(%arg0: i32) -> (i32, i32) {
    %c0_i32 = arith.constant 0 : i32
    %c0_i32_0 = arith.constant 0 : i32
    %c0_i32_1 = arith.constant 0 : i32
    return %c0_i32, %c0_i32_0 : i32, i32
  }
  func.func @transform_2(%arg0: i32) -> (i32, i32) {
    %c0_i32 = arith.constant 0 : i32
    %c0_i32_0 = arith.constant 0 : i32
    %c0_i32_1 = arith.constant 0 : i32
    return %c0_i32, %c0_i32_0 : i32, i32
  }
  func.func @transform_3(%arg0: i32) -> (i32, i32) {
    %c0_i32 = arith.constant 0 : i32
    %c0_i32_0 = arith.constant 0 : i32
    %c0_i32_1 = arith.constant 0 : i32
    return %c0_i32, %c0_i32_0 : i32, i32
  }
  func.func @transform_4(%arg0: i32) -> (i32, i32) {
    %c0_i32 = arith.constant 0 : i32
    %c0_i32_0 = arith.constant 0 : i32
    %c0_i32_1 = arith.constant 0 : i32
    return %c0_i32, %c0_i32_0 : i32, i32
  }
  func.func @transform_5(%arg0: i32) -> (i32, i32) {
    %c0_i32 = arith.constant 0 : i32
    %c0_i32_0 = arith.constant 0 : i32
    %c0_i32_1 = arith.constant 0 : i32
    return %c0_i32, %c0_i32_0 : i32, i32
  }
  func.func @transform_6(%arg0: i32) -> (i32, i32) {
    %c0_i32 = arith.constant 0 : i32
    %c0_i32_0 = arith.constant 0 : i32
    %c0_i32_1 = arith.constant 0 : i32
    return %c0_i32, %c0_i32_0 : i32, i32
  }
  func.func @transform_7(%arg0: i32) -> (i32, i32) {
    %c0_i32 = arith.constant 0 : i32
    %c0_i32_0 = arith.constant 0 : i32
    %c0_i32_1 = arith.constant 0 : i32
    return %c0_i32, %c0_i32_0 : i32, i32
  }
  func.func @transform_8(%arg0: i32) -> (i32, i32) {
    %c0_i32 = arith.constant 0 : i32
    %c0_i32_0 = arith.constant 0 : i32
    %c0_i32_1 = arith.constant 0 : i32
    return %c0_i32, %c0_i32_0 : i32, i32
  }
  func.func @transform_9(%arg0: i32) -> (i32, i32, i32) {
    %c0_i32 = arith.constant 0 : i32
    %c0_i32_0 = arith.constant 0 : i32
    %c0_i32_1 = arith.constant 0 : i32
    return %arg0, %c0_i32, %c0_i32_0 : i32, i32, i32
  }
}

</mosaic_0001>

<llo_original>
// kernel: tpu_custom_call.1
$region0: #{tpu_custom_call.1}
  #allocation0 [shape = 'u32[]', space=smem, size = 0x4, offset = 0x4, fixed_abs, tag = 'smem constant byte address 0x4 - core index']
  #allocation1 [shape = 'u32[72,128]{1,0:T(1,128)}', space=vmem, size = 0x9000, scoped, tag = 'internal scratch']
  %s0 = inlined_call_operand.vmem [shape: f32[1,16,4], index: 0, kind: input, shape index: {}]
  %s1 = inlined_call_operand.vmem [shape: f32[4,16], index: 1, kind: input, shape index: {}]
  %s2 = inlined_call_operand.vmem [shape: f32[16,96], index: 2, kind: input, shape index: {}]
  %s3 = inlined_call_operand.vmem [shape: f32[32,96], index: 3, kind: input, shape index: {}]
  %s4 = inlined_call_operand.vmem [shape: f32[4,128], index: 4, kind: input, shape index: {}]
  %s5 = inlined_call_operand.hbm [shape: f32[32,128], index: 5, kind: input, shape index: {}]
  %s6 = inlined_call_operand.vmem [shape: f32[32,8], index: 6, kind: input, shape index: {}]
  %s7 = inlined_call_operand.vmem [shape: f32[8,4], index: 7, kind: input, shape index: {}]
  %s8 = inlined_call_operand.vmem [shape: f32[1,768], index: 8, kind: input, shape index: {}]
  %s9 = inlined_call_operand.vmem [shape: f32[1,16,4], index: 9, kind: output, shape index: {}]
  %s10 = sld [smem:[#allocation0]]
  $region50: #{tpu_custom_call.1} parent=0
    _
  %s12 = ssub.s32 1, %s10
  %s13 = scalar_select 0, %s12, %s10
  $region1: #{tpu_custom_call.1} parent=0
    #allocation2 [shape = 'u8[16384]{0}', space=vmem, size = 0x4000, scoped, tag = 'input window, operand 5, single buffered']
    #allocation3 [shape = 's32[1]{0}', space=sflag, size = 0x4, scoped, tag = 'scoped memory for tpu_custom_call.1']
    %14 = vsyncpa [#allocation3], 0
    // Predicated region
    $region2: #{tpu_custom_call.1} parent=1 // pred_check
      _
    $region3: #{tpu_custom_call.1} parent=1 // pred_check_branch
      %16 = sbr.rel (0) target = $region5
    $region4: #{tpu_custom_call.1} parent=1 // pred_region
      _
    $region5: #{tpu_custom_call.1} parent=1 // pred_fallthru
      _
    // Predicated region
    $region6: #{tpu_custom_call.1} parent=1 // pred_check
      _
    $region7: #{tpu_custom_call.1} parent=1 // pred_check_branch
      %18 = sbr.rel (0) target = $region9
    $region8: #{tpu_custom_call.1} parent=1 // pred_region
      _
    $region9: #{tpu_custom_call.1} parent=1 // pred_fallthru
      _
    // Predicated region
    $region10: #{tpu_custom_call.1} parent=1 // pred_check
      _
    $region11: #{tpu_custom_call.1} parent=1 // pred_check_branch
      %20 = sbr.rel (0) target = $region13
    $region12: #{tpu_custom_call.1} parent=1 // pred_region
      _
    $region13: #{tpu_custom_call.1} parent=1 // pred_fallthru
      _
    // Predicated region
    $region14: #{tpu_custom_call.1} parent=1 // pred_check
      _
    $region15: #{tpu_custom_call.1} parent=1 // pred_check_branch
      %22 = sbr.rel (0) target = $region17
    $region16: #{tpu_custom_call.1} parent=1 // pred_region
      _
    $region17: #{tpu_custom_call.1} parent=1 // pred_fallthru
      _
    // Predicated region
    $region18: #{tpu_custom_call.1} parent=1 // pred_check
      _
    $region19: #{tpu_custom_call.1} parent=1 // pred_check_branch
      %24 = sbr.rel (0) target = $region21
    $region20: #{tpu_custom_call.1} parent=1 // pred_region
      _
    $region21: #{tpu_custom_call.1} parent=1 // pred_fallthru
      _
    // Predicated region
    $region22: #{tpu_custom_call.1} parent=1 // pred_check
      _
    $region23: #{tpu_custom_call.1} parent=1 // pred_check_branch
      %26 = sbr.rel (0) target = $region25
    $region24: #{tpu_custom_call.1} parent=1 // pred_region
      %28 = vsyncadd [#allocation3], 0
      %s29 = sshll.u32 %s5, 4
      %s30 = int_to_ptr.hbm [resolvable:$true] %s29
      %s31 = sshll.u32 [#allocation2], 4
      %s32 = int_to_ptr.vmem [resolvable:$true] %s31
      %37 = dma.hbm_to_vmem [thread:$0]  %s30, 512, %s32, [#allocation3], 128, 128, 8
    $region25: #{tpu_custom_call.1} parent=1 // pred_fallthru
      _
    // Predicated region
    $region26: #{tpu_custom_call.1} parent=1 // pred_check
      _
    $region27: #{tpu_custom_call.1} parent=1 // pred_check_branch
      %39 = sbr.rel (0) target = $region29
    $region28: #{tpu_custom_call.1} parent=1 // pred_region
      _
    $region29: #{tpu_custom_call.1} parent=1 // pred_fallthru
      _
    // Predicated region
    $region30: #{tpu_custom_call.1} parent=1 // pred_check
      _
    $region31: #{tpu_custom_call.1} parent=1 // pred_check_branch
      %41 = sbr.rel (0) target = $region33
    $region32: #{tpu_custom_call.1} parent=1 // pred_region
      _
    $region33: #{tpu_custom_call.1} parent=1 // pred_fallthru
      _
    // Predicated region
    $region34: #{tpu_custom_call.1} parent=1 // pred_check
      _
    $region35: #{tpu_custom_call.1} parent=1 // pred_check_branch
      %43 = sbr.rel (0) target = $region37
    $region36: #{tpu_custom_call.1} parent=1 // pred_region
      _
    $region37: #{tpu_custom_call.1} parent=1 // pred_fallthru
      _
    // Predicated region
    $region38: #{tpu_custom_call.1} parent=1 // pred_check
      _
    $region39: #{tpu_custom_call.1} parent=1 // pred_check_branch
      %45 = sbr.rel (0) target = $region41
    $region40: #{tpu_custom_call.1} parent=1 // pred_region
      %47 = dma.done [#allocation3], 512
    $region41: #{tpu_custom_call.1} parent=1 // pred_fallthru
      _
    %v48 = vld [vmem:[%s0] sm:$0xff]
    %v49 = vld [vmem:[%s0 + $0x8] sm:$0xff]
    %v50 = vld [vmem:[%s1] sm:$0xf]
    %v51 = vld [vmem:[%s2] sm:$0xff]
    %v52 = vld [vmem:[%s2 + $0x8] sm:$0xff]
    %v53 = vld [vmem:[%s3] sm:$0xff]
    %v54 = vld [vmem:[%s3 + $0x8] sm:$0xff]
    %v55 = vld [vmem:[%s3 + $0x10] sm:$0xff]
    %v56 = vld [vmem:[%s3 + $0x18] sm:$0xff]
    %v57 = vld [vmem:[%s4] sm:$0xf]
    %v58 = vld [vmem:[#allocation2] sm:$0xff]
    %v59 = vld [vmem:[#allocation2 + $0x8] sm:$0xff]
    %v60 = vld [vmem:[#allocation2 + $0x10] sm:$0xff]
    %v61 = vld [vmem:[#allocation2 + $0x18] sm:$0xff]
    %v62 = vld [vmem:[%s6] sm:$0xff]
    %v63 = vld [vmem:[%s6 + $0x8] sm:$0xff]
    %v64 = vld [vmem:[%s6 + $0x10] sm:$0xff]
    %v65 = vld [vmem:[%s6 + $0x18] sm:$0xff]
    %v66 = vld [vmem:[%s7] sm:$0xff]
    %v67 = vld [vmem:[%s8] sm:$0x1]
    %v68 = vld [vmem:[%s8 + $0x1] sm:$0x1]
    %v69 = vld [vmem:[%s8 + $0x2] sm:$0x1]
    %v70 = vld [vmem:[%s8 + $0x3] sm:$0x1]
    %v71 = vld [vmem:[%s8 + $0x4] sm:$0x1]
    %v72 = vld [vmem:[%s8 + $0x5] sm:$0x1]
    %v74 = vperm.slane %v67, 0
    %vm76 = vcmask 31744
    %v78 = vsel %vm76, %v48, 0
    %v81 = vsel %vm76, %v49, 0
    %vm83 = vcmask 1043456
    %v85 = vsel %vm83, %v50, 0
    %87 = vmatpush.msra.mxu0 0.0
    %88 = vmatpush.msra.mxu0 0.0
    %89 = vmatpush.msra.mxu0 0.0
    %90 = vmatpush.msra.mxu0 0.0
    %91 = vmatpush.msra.mxu0 0.0
    %92 = vmatpush.msra.mxu0 0.0
    %93 = vmatpush.msra.mxu0 0.0
    %94 = vmatpush.msra.mxu0 0.0
    %95 = vmatpush.msra.mxu0 0.0
    %96 = vmatpush.msra.mxu0 0.0
    %97 = vmatpush.msra.mxu0 0.0
    %98 = vmatpush.msra.mxu0 0.0
    %99 = vmatpush.msra.mxu0 0.0
    %100 = vmatpush.msra.mxu0 0.0
    %101 = vmatpush.msra.mxu0 0.0
    %102 = vmatpush.msra.mxu0 %v85
    %103 = vmatmul.f32.gmra.mxu0 %v78
    %v104 = vpop.f32.mrf.mxu0
    %v105 = vadd.f32 %v74, %v104
    %106 = vmatmul.f32.gmra.mxu0 %v81
    %v107 = vpop.f32.mrf.mxu0
    %v108 = vadd.f32 %v74, %v107
    %109 = vdwg.mxu0
    %v110 = vmax.f32 %v105, 0.0
    %v111 = vmax.f32 %v108, 0.0
    %v113 = vperm.slane %v68, 0
    %vm115 = vcmask 130048
    %v117 = vsel %vm115, %v110, 0
    %v120 = vsel %vm115, %v111, 0
    %122 = vmatpush.msra.mxu0 0.0
    %123 = vmatpush.msra.mxu0 0.0
    %124 = vmatpush.msra.mxu0 0.0
    %125 = vmatpush.msra.mxu0 0.0
    %126 = vmatpush.msra.mxu0 0.0
    %127 = vmatpush.msra.mxu0 0.0
    %128 = vmatpush.msra.mxu0 0.0
    %129 = vmatpush.msra.mxu0 0.0
    %130 = vmatpush.msra.mxu0 0.0
    %131 = vmatpush.msra.mxu0 0.0
    %132 = vmatpush.msra.mxu0 0.0
    %133 = vmatpush.msra.mxu0 0.0
    %134 = vmatpush.msra.mxu0 0.0
    %135 = vmatpush.msra.mxu0 0.0
    %136 = vmatpush.msra.mxu0 %v52
    %137 = vmatpush.msra.mxu0 %v51
    %138 = vmatmul.f32.gmra.mxu0 %v117
    %v139 = vpop.f32.mrf.mxu0
    %v140 = vadd.f32 %v113, %v139
    %141 = vmatmul.f32.gmra.mxu0 %v120
    %v142 = vpop.f32.mrf.mxu0
    %v143 = vadd.f32 %v113, %v142
    %144 = vdwg.mxu0
    %v146 = vperm.slane %v70, 0
    %v149 = vsel %vm83, %v57, 0
    %151 = vmatpush.msra.mxu0 0.0
    %152 = vmatpush.msra.mxu0 0.0
    %153 = vmatpush.msra.mxu0 0.0
    %154 = vmatpush.msra.mxu0 0.0
    %155 = vmatpush.msra.mxu0 0.0
    %156 = vmatpush.msra.mxu0 0.0
    %157 = vmatpush.msra.mxu0 0.0
    %158 = vmatpush.msra.mxu0 0.0
    %159 = vmatpush.msra.mxu0 0.0
    %160 = vmatpush.msra.mxu0 0.0
    %161 = vmatpush.msra.mxu0 0.0
    %162 = vmatpush.msra.mxu0 0.0
    %163 = vmatpush.msra.mxu0 0.0
    %164 = vmatpush.msra.mxu0 0.0
    %165 = vmatpush.msra.mxu0 0.0
    %166 = vmatpush.msra.mxu0 %v149
    %167 = vmatmul.f32.gmra.mxu0 %v78
    %v168 = vpop.f32.mrf.mxu0
    %v169 = vadd.f32 %v146, %v168
    %170 = vmatmul.f32.gmra.mxu0 %v81
    %v171 = vpop.f32.mrf.mxu0
    %v172 = vadd.f32 %v146, %v171
    %173 = vdwg.mxu0
    %vm174 = vcmask 261120
    %v176 = vsel %vm174, 0.0, 0
    %178 = vmatpush.msra.mxu0 0.0
    %179 = vmatpush.msra.mxu0 0.0
    %180 = vmatpush.msra.mxu0 0.0
    %181 = vmatpush.msra.mxu0 0.0
    %182 = vmatpush.msra.mxu0 0.0
    %183 = vmatpush.msra.mxu0 0.0
    %184 = vmatpush.msra.mxu0 0.0
    %185 = vmatpush.msra.mxu0 0.0
    %186 = vmatpush.msra.mxu0 0.0
    %187 = vmatpush.msra.mxu0 0.0
    %188 = vmatpush.msra.mxu0 0.0
    %189 = vmatpush.msra.mxu0 0.0
    %190 = vmatpush.msra.mxu0 %v56
    %191 = vmatpush.msra.mxu0 %v55
    %192 = vmatpush.msra.mxu0 %v54
    %193 = vmatpush.msra.mxu0 %v53
    %194 = vmatmul.f32.gmra.mxu0 %v176
    %v195 = vpop.f32.mrf.mxu0
    %v196 = vadd.f32 0.0, %v195
    %197 = vdwg.mxu0
    %v198 = vadd.f32 %v140, %v196
    %v199 = vxor.u32 %v198, 2147483648
    %v200 = vmul.f32 %v199, 1.442695
    %v201 = vpow.pop %v200
    %v202 = vadd.f32 %v201, 1.0
    %v203 = vrcp.pop %v202
    %v204 = vmul.f32 %v202, %v203
    %v205 = vsub.f32 1.0, %v204
    %v206 = vmul.f32 %v203, %v205
    %v207 = vadd.f32 %v203, %v206
    %vm208 = vweird.f32 %v202
    %vm209 = vweird.f32 %v203
    %vm210 = vmor %vm208, %vm209
    %v211 = vsel %vm210, %v203, %v207
    %v212 = vand.u32 2147483647, %v202
    %vm213 = vcmp.eq.f32.partialorder %v212, 8.507059e+37
    %v214 = vand.u32 %v202, 2147483648
    %v215 = vor.u32 1.1754944e-38, %v214
    %v216 = vsel %vm213, %v215, %v211
    %v217 = vmul.f32 1.0, %v216
    %v219 = vperm.slane %v69, 0
    %220 = vrot.lane.b32.xlu0 %v219, 64
    %v221 = vpop.permute.xlu0 %220
    %v223 = vadd.f32 %v196, %v221
    %225 = vrot.lane.b32.xlu0 %v223, 64
    %v226 = vpop.permute.xlu0 %225
    %v228 = vmul.f32 %v217, %v226
    %230 = vrot.lane.b32.xlu0 %v228, 64
    %v231 = vpop.permute.xlu0 %230
    %v233 = vadd.f32 %v140, %v231
    %v234 = vtanh.pop %v233
    %v235 = vsub.f32 1.0, %v217
    %237 = vrot.lane.b32.xlu0 %v234, 96
    %v238 = vpop.permute.xlu0 %237
    %v240 = vmul.f32 %v235, %v238
    %v241 = vmul.f32 %v217, 0.0
    %v242 = vadd.f32 %v240, %v241
    %244 = vrot.lane.b32.xlu0 %v242, 96
    %v245 = vpop.permute.xlu0 %244
    %v246 = vsel %vm174, %v245, 0
    %248 = vmatpush.msra.mxu0 0.0
    %249 = vmatpush.msra.mxu0 0.0
    %250 = vmatpush.msra.mxu0 0.0
    %251 = vmatpush.msra.mxu0 0.0
    %252 = vmatpush.msra.mxu0 0.0
    %253 = vmatpush.msra.mxu0 0.0
    %254 = vmatpush.msra.mxu0 0.0
    %255 = vmatpush.msra.mxu0 0.0
    %256 = vmatpush.msra.mxu0 0.0
    %257 = vmatpush.msra.mxu0 0.0
    %258 = vmatpush.msra.mxu0 0.0
    %259 = vmatpush.msra.mxu0 0.0
    %260 = vmatpush.msra.mxu0 %v56
    %261 = vmatpush.msra.mxu0 %v55
    %262 = vmatpush.msra.mxu0 %v54
    %263 = vmatpush.msra.mxu0 %v53
    %264 = vmatmul.f32.gmra.mxu0 %v246
    %v265 = vpop.f32.mrf.mxu0
    %v266 = vadd.f32 0.0, %v265
    %267 = vdwg.mxu0
    %v269 = vrot.slane %v266, 6
    %v271 = vadd.f32 %v140, %v269
    %v272 = vxor.u32 %v271, 2147483648
    %v273 = vmul.f32 %v272, 1.442695
    %v274 = vpow.pop %v273
    %v275 = vadd.f32 %v274, 1.0
    %v276 = vrcp.pop %v275
    %v277 = vmul.f32 %v275, %v276
    %v278 = vsub.f32 1.0, %v277
    %v279 = vmul.f32 %v276, %v278
    %v280 = vadd.f32 %v276, %v279
    %vm281 = vweird.f32 %v275
    %vm282 = vweird.f32 %v276
    %vm283 = vmor %vm281, %vm282
    %v284 = vsel %vm283, %v276, %v280
    %v285 = vand.u32 2147483647, %v275
    %vm286 = vcmp.eq.f32.partialorder %v285, 8.507059e+37
    %v287 = vand.u32 %v275, 2147483648
    %v288 = vor.u32 1.1754944e-38, %v287
    %v289 = vsel %vm286, %v288, %v284
    %v290 = vmul.f32 1.0, %v289
    %v291 = vadd.f32 %v266, %v221
    %v293 = vrot.slane %v291, 6
    %294 = vrot.lane.b32.xlu0 %v293, 64
    %v295 = vpop.permute.xlu0 %294
    %v297 = vmul.f32 %v290, %v295
    %299 = vrot.lane.b32.xlu0 %v297, 64
    %v300 = vpop.permute.xlu0 %299
    %v302 = vadd.f32 %v140, %v300
    %v303 = vtanh.pop %v302
    %v304 = vsub.f32 1.0, %v290
    %306 = vrot.lane.b32.xlu0 %v303, 96
    %v307 = vpop.permute.xlu0 %306
    %v309 = vmul.f32 %v304, %v307
    %v310 = vrot.slane %v242, 6
    %v312 = vmul.f32 %v290, %v310
    %v313 = vadd.f32 %v309, %v312
    %v315 = vrot.slane %v313, 2
    %316 = vrot.lane.b32.xlu0 %v315, 96
    %v317 = vpop.permute.xlu0 %316
    %v318 = vsel %vm174, %v317, 0
    %320 = vmatpush.msra.mxu0 0.0
    %321 = vmatpush.msra.mxu0 0.0
    %322 = vmatpush.msra.mxu0 0.0
    %323 = vmatpush.msra.mxu0 0.0
    %324 = vmatpush.msra.mxu0 0.0
    %325 = vmatpush.msra.mxu0 0.0
    %326 = vmatpush.msra.mxu0 0.0
    %327 = vmatpush.msra.mxu0 0.0
    %328 = vmatpush.msra.mxu0 0.0
    %329 = vmatpush.msra.mxu0 0.0
    %330 = vmatpush.msra.mxu0 0.0
    %331 = vmatpush.msra.mxu0 0.0
    %332 = vmatpush.msra.mxu0 %v56
    %333 = vmatpush.msra.mxu0 %v55
    %334 = vmatpush.msra.mxu0 %v54
    %335 = vmatpush.msra.mxu0 %v53
    %336 = vmatmul.f32.gmra.mxu0 %v318
    %v337 = vpop.f32.mrf.mxu0
    %v338 = vadd.f32 0.0, %v337
    %339 = vdwg.mxu0
    %v341 = vrot.slane %v338, 4
    %v343 = vadd.f32 %v140, %v341
    %v344 = vxor.u32 %v343, 2147483648
    %v345 = vmul.f32 %v344, 1.442695
    %v346 = vpow.pop %v345
    %v347 = vadd.f32 %v346, 1.0
    %v348 = vrcp.pop %v347
    %v349 = vmul.f32 %v347, %v348
    %v350 = vsub.f32 1.0, %v349
    %v351 = vmul.f32 %v348, %v350
    %v352 = vadd.f32 %v348, %v351
    %vm353 = vweird.f32 %v347
    %vm354 = vweird.f32 %v348
    %vm355 = vmor %vm353, %vm354
    %v356 = vsel %vm355, %v348, %v352
    %v357 = vand.u32 2147483647, %v347
    %vm358 = vcmp.eq.f32.partialorder %v357, 8.507059e+37
    %v359 = vand.u32 %v347, 2147483648
    %v360 = vor.u32 1.1754944e-38, %v359
    %v361 = vsel %vm358, %v360, %v356
    %v362 = vmul.f32 1.0, %v361
    %v363 = vadd.f32 %v338, %v221
    %v365 = vrot.slane %v363, 4
    %366 = vrot.lane.b32.xlu0 %v365, 64
    %v367 = vpop.permute.xlu0 %366
    %v369 = vmul.f32 %v362, %v367
    %371 = vrot.lane.b32.xlu0 %v369, 64
    %v372 = vpop.permute.xlu0 %371
    %v374 = vadd.f32 %v140, %v372
    %v375 = vtanh.pop %v374
    %v376 = vsub.f32 1.0, %v362
    %378 = vrot.lane.b32.xlu0 %v375, 96
    %v379 = vpop.permute.xlu0 %378
    %v381 = vmul.f32 %v376, %v379
    %v382 = vrot.slane %v313, 6
    %v384 = vmul.f32 %v362, %v382
    %v385 = vadd.f32 %v381, %v384
    %v387 = vrot.slane %v385, 4
    %388 = vrot.lane.b32.xlu0 %v387, 96
    %v389 = vpop.permute.xlu0 %388
    %v390 = vsel %vm174, %v389, 0
    %392 = vmatpush.msra.mxu0 0.0
    %393 = vmatpush.msra.mxu0 0.0
    %394 = vmatpush.msra.mxu0 0.0
    %395 = vmatpush.msra.mxu0 0.0
    %396 = vmatpush.msra.mxu0 0.0
    %397 = vmatpush.msra.mxu0 0.0
    %398 = vmatpush.msra.mxu0 0.0
    %399 = vmatpush.msra.mxu0 0.0
    %400 = vmatpush.msra.mxu0 0.0
    %401 = vmatpush.msra.mxu0 0.0
    %402 = vmatpush.msra.mxu0 0.0
    %403 = vmatpush.msra.mxu0 0.0
    %404 = vmatpush.msra.mxu0 %v56
    %405 = vmatpush.msra.mxu0 %v55
    %406 = vmatpush.msra.mxu0 %v54
    %407 = vmatpush.msra.mxu0 %v53
    %408 = vmatmul.f32.gmra.mxu0 %v390
    %v409 = vpop.f32.mrf.mxu0
    %v410 = vadd.f32 0.0, %v409
    %411 = vdwg.mxu0
    %v413 = vrot.slane %v410, 2
    %v415 = vadd.f32 %v140, %v413
    %v416 = vxor.u32 %v415, 2147483648
    %v417 = vmul.f32 %v416, 1.442695
    %v418 = vpow.pop %v417
    %v419 = vadd.f32 %v418, 1.0
    %v420 = vrcp.pop %v419
    %v421 = vmul.f32 %v419, %v420
    %v422 = vsub.f32 1.0, %v421
    %v423 = vmul.f32 %v420, %v422
    %v424 = vadd.f32 %v420, %v423
    %vm425 = vweird.f32 %v419
    %vm426 = vweird.f32 %v420
    %vm427 = vmor %vm425, %vm426
    %v428 = vsel %vm427, %v420, %v424
    %v429 = vand.u32 2147483647, %v419
    %vm430 = vcmp.eq.f32.partialorder %v429, 8.507059e+37
    %v431 = vand.u32 %v419, 2147483648
    %v432 = vor.u32 1.1754944e-38, %v431
    %v433 = vsel %vm430, %v432, %v428
    %v434 = vmul.f32 1.0, %v433
    %v435 = vadd.f32 %v410, %v221
    %v437 = vrot.slane %v435, 2
    %438 = vrot.lane.b32.xlu0 %v437, 64
    %v439 = vpop.permute.xlu0 %438
    %v441 = vmul.f32 %v434, %v439
    %443 = vrot.lane.b32.xlu0 %v441, 64
    %v444 = vpop.permute.xlu0 %443
    %v446 = vadd.f32 %v140, %v444
    %v447 = vtanh.pop %v446
    %v448 = vsub.f32 1.0, %v434
    %450 = vrot.lane.b32.xlu0 %v447, 96
    %v451 = vpop.permute.xlu0 %450
    %v453 = vmul.f32 %v448, %v451
    %v454 = vrot.slane %v385, 6
    %v456 = vmul.f32 %v434, %v454
    %v457 = vadd.f32 %v453, %v456
    %v459 = vrot.slane %v457, 6
    %460 = vrot.lane.b32.xlu0 %v459, 96
    %v461 = vpop.permute.xlu0 %460
    %v462 = vsel %vm174, %v461, 0
    %464 = vmatpush.msra.mxu0 0.0
    %465 = vmatpush.msra.mxu0 0.0
    %466 = vmatpush.msra.mxu0 0.0
    %467 = vmatpush.msra.mxu0 0.0
    %468 = vmatpush.msra.mxu0 0.0
    %469 = vmatpush.msra.mxu0 0.0
    %470 = vmatpush.msra.mxu0 0.0
    %471 = vmatpush.msra.mxu0 0.0
    %472 = vmatpush.msra.mxu0 0.0
    %473 = vmatpush.msra.mxu0 0.0
    %474 = vmatpush.msra.mxu0 0.0
    %475 = vmatpush.msra.mxu0 0.0
    %476 = vmatpush.msra.mxu0 %v56
    %477 = vmatpush.msra.mxu0 %v55
    %478 = vmatpush.msra.mxu0 %v54
    %479 = vmatpush.msra.mxu0 %v53
    %480 = vmatmul.f32.gmra.mxu0 %v462
    %v481 = vpop.f32.mrf.mxu0
    %v482 = vadd.f32 0.0, %v481
    %483 = vdwg.mxu0
    %v484 = vadd.f32 %v143, %v482
    %v485 = vxor.u32 %v484, 2147483648
    %v486 = vmul.f32 %v485, 1.442695
    %v487 = vpow.pop %v486
    %v488 = vadd.f32 %v487, 1.0
    %v489 = vrcp.pop %v488
    %v490 = vmul.f32 %v488, %v489
    %v491 = vsub.f32 1.0, %v490
    %v492 = vmul.f32 %v489, %v491
    %v493 = vadd.f32 %v489, %v492
    %vm494 = vweird.f32 %v488
    %vm495 = vweird.f32 %v489
    %vm496 = vmor %vm494, %vm495
    %v497 = vsel %vm496, %v489, %v493
    %v498 = vand.u32 2147483647, %v488
    %vm499 = vcmp.eq.f32.partialorder %v498, 8.507059e+37
    %v500 = vand.u32 %v488, 2147483648
    %v501 = vor.u32 1.1754944e-38, %v500
    %v502 = vsel %vm499, %v501, %v497
    %v503 = vmul.f32 1.0, %v502
    %v504 = vadd.f32 %v482, %v221
    %506 = vrot.lane.b32.xlu0 %v504, 64
    %v507 = vpop.permute.xlu0 %506
    %v509 = vmul.f32 %v503, %v507
    %511 = vrot.lane.b32.xlu0 %v509, 64
    %v512 = vpop.permute.xlu0 %511
    %v514 = vadd.f32 %v143, %v512
    %v515 = vtanh.pop %v514
    %v516 = vsub.f32 1.0, %v503
    %518 = vrot.lane.b32.xlu0 %v515, 96
    %v519 = vpop.permute.xlu0 %518
    %v521 = vmul.f32 %v516, %v519
    %v523 = vmul.f32 %v503, %v459
    %v524 = vadd.f32 %v521, %v523
    %526 = vrot.lane.b32.xlu0 %v524, 96
    %v527 = vpop.permute.xlu0 %526
    %v528 = vsel %vm174, %v527, 0
    %530 = vmatpush.msra.mxu0 0.0
    %531 = vmatpush.msra.mxu0 0.0
    %532 = vmatpush.msra.mxu0 0.0
    %533 = vmatpush.msra.mxu0 0.0
    %534 = vmatpush.msra.mxu0 0.0
    %535 = vmatpush.msra.mxu0 0.0
    %536 = vmatpush.msra.mxu0 0.0
    %537 = vmatpush.msra.mxu0 0.0
    %538 = vmatpush.msra.mxu0 0.0
    %539 = vmatpush.msra.mxu0 0.0
    %540 = vmatpush.msra.mxu0 0.0
    %541 = vmatpush.msra.mxu0 0.0
    %542 = vmatpush.msra.mxu0 %v56
    %543 = vmatpush.msra.mxu0 %v55
    %544 = vmatpush.msra.mxu0 %v54
    %545 = vmatpush.msra.mxu0 %v53
    %546 = vmatmul.f32.gmra.mxu0 %v528
    %v547 = vpop.f32.mrf.mxu0
    %v548 = vadd.f32 0.0, %v547
    %549 = vdwg.mxu0
    %v551 = vrot.slane %v548, 6
    %v553 = vadd.f32 %v143, %v551
    %v554 = vxor.u32 %v553, 2147483648
    %v555 = vmul.f32 %v554, 1.442695
    %v556 = vpow.pop %v555
    %v557 = vadd.f32 %v556, 1.0
    %v558 = vrcp.pop %v557
    %v559 = vmul.f32 %v557, %v558
    %v560 = vsub.f32 1.0, %v559
    %v561 = vmul.f32 %v558, %v560
    %v562 = vadd.f32 %v558, %v561
    %vm563 = vweird.f32 %v557
    %vm564 = vweird.f32 %v558
    %vm565 = vmor %vm563, %vm564
    %v566 = vsel %vm565, %v558, %v562
    %v567 = vand.u32 2147483647, %v557
    %vm568 = vcmp.eq.f32.partialorder %v567, 8.507059e+37
    %v569 = vand.u32 %v557, 2147483648
    %v570 = vor.u32 1.1754944e-38, %v569
    %v571 = vsel %vm568, %v570, %v566
    %v572 = vmul.f32 1.0, %v571
    %v573 = vadd.f32 %v548, %v221
    %v575 = vrot.slane %v573, 6
    %576 = vrot.lane.b32.xlu0 %v575, 64
    %v577 = vpop.permute.xlu0 %576
    %v579 = vmul.f32 %v572, %v577
    %581 = vrot.lane.b32.xlu0 %v579, 64
    %v582 = vpop.permute.xlu0 %581
    %v584 = vadd.f32 %v143, %v582
    %v585 = vtanh.pop %v584
    %v586 = vsub.f32 1.0, %v572
    %588 = vrot.lane.b32.xlu0 %v585, 96
    %v589 = vpop.permute.xlu0 %588
    %v591 = vmul.f32 %v586, %v589
    %v592 = vrot.slane %v524, 6
    %v594 = vmul.f32 %v572, %v592
    %v595 = vadd.f32 %v591, %v594
    %v597 = vrot.slane %v595, 2
    %598 = vrot.lane.b32.xlu0 %v597, 96
    %v599 = vpop.permute.xlu0 %598
    %v600 = vsel %vm174, %v599, 0
    %602 = vmatpush.msra.mxu0 0.0
    %603 = vmatpush.msra.mxu0 0.0
    %604 = vmatpush.msra.mxu0 0.0
    %605 = vmatpush.msra.mxu0 0.0
    %606 = vmatpush.msra.mxu0 0.0
    %607 = vmatpush.msra.mxu0 0.0
    %608 = vmatpush.msra.mxu0 0.0
    %609 = vmatpush.msra.mxu0 0.0
    %610 = vmatpush.msra.mxu0 0.0
    %611 = vmatpush.msra.mxu0 0.0
    %612 = vmatpush.msra.mxu0 0.0
    %613 = vmatpush.msra.mxu0 0.0
    %614 = vmatpush.msra.mxu0 %v56
    %615 = vmatpush.msra.mxu0 %v55
    %616 = vmatpush.msra.mxu0 %v54
    %617 = vmatpush.msra.mxu0 %v53
    %618 = vmatmul.f32.gmra.mxu0 %v600
    %v619 = vpop.f32.mrf.mxu0
    %v620 = vadd.f32 0.0, %v619
    %621 = vdwg.mxu0
    %v623 = vrot.slane %v620, 4
    %v625 = vadd.f32 %v143, %v623
    %v626 = vxor.u32 %v625, 2147483648
    %v627 = vmul.f32 %v626, 1.442695
    %v628 = vpow.pop %v627
    %v629 = vadd.f32 %v628, 1.0
    %v630 = vrcp.pop %v629
    %v631 = vmul.f32 %v629, %v630
    %v632 = vsub.f32 1.0, %v631
    %v633 = vmul.f32 %v630, %v632
    %v634 = vadd.f32 %v630, %v633
    %vm635 = vweird.f32 %v629
    %vm636 = vweird.f32 %v630
    %vm637 = vmor %vm635, %vm636
    %v638 = vsel %vm637, %v630, %v634
    %v639 = vand.u32 2147483647, %v629
    %vm640 = vcmp.eq.f32.partialorder %v639, 8.507059e+37
    %v641 = vand.u32 %v629, 2147483648
    %v642 = vor.u32 1.1754944e-38, %v641
    %v643 = vsel %vm640, %v642, %v638
    %v644 = vmul.f32 1.0, %v643
    %v645 = vadd.f32 %v620, %v221
    %v647 = vrot.slane %v645, 4
    %648 = vrot.lane.b32.xlu0 %v647, 64
    %v649 = vpop.permute.xlu0 %648
    %v651 = vmul.f32 %v644, %v649
    %653 = vrot.lane.b32.xlu0 %v651, 64
    %v654 = vpop.permute.xlu0 %653
    %v656 = vadd.f32 %v143, %v654
    %v657 = vtanh.pop %v656
    %v658 = vsub.f32 1.0, %v644
    %660 = vrot.lane.b32.xlu0 %v657, 96
    %v661 = vpop.permute.xlu0 %660
    %v663 = vmul.f32 %v658, %v661
    %v664 = vrot.slane %v595, 6
    %v666 = vmul.f32 %v644, %v664
    %v667 = vadd.f32 %v663, %v666
    %v669 = vrot.slane %v667, 4
    %670 = vrot.lane.b32.xlu0 %v669, 96
    %v671 = vpop.permute.xlu0 %670
    %v672 = vsel %vm174, %v671, 0
    %674 = vmatpush.msra.mxu0 0.0
    %675 = vmatpush.msra.mxu0 0.0
    %676 = vmatpush.msra.mxu0 0.0
    %677 = vmatpush.msra.mxu0 0.0
    %678 = vmatpush.msra.mxu0 0.0
    %679 = vmatpush.msra.mxu0 0.0
    %680 = vmatpush.msra.mxu0 0.0
    %681 = vmatpush.msra.mxu0 0.0
    %682 = vmatpush.msra.mxu0 0.0
    %683 = vmatpush.msra.mxu0 0.0
    %684 = vmatpush.msra.mxu0 0.0
    %685 = vmatpush.msra.mxu0 0.0
    %686 = vmatpush.msra.mxu0 %v56
    %687 = vmatpush.msra.mxu0 %v55
    %688 = vmatpush.msra.mxu0 %v54
    %689 = vmatpush.msra.mxu0 %v53
    %690 = vmatmul.f32.gmra.mxu0 %v672
    %v691 = vpop.f32.mrf.mxu0
    %v692 = vadd.f32 0.0, %v691
    %693 = vdwg.mxu0
    %v695 = vrot.slane %v692, 2
    %v697 = vadd.f32 %v143, %v695
    %v698 = vxor.u32 %v697, 2147483648
    %v699 = vmul.f32 %v698, 1.442695
    %v700 = vpow.pop %v699
    %v701 = vadd.f32 %v700, 1.0
    %v702 = vrcp.pop %v701
    %v703 = vmul.f32 %v701, %v702
    %v704 = vsub.f32 1.0, %v703
    %v705 = vmul.f32 %v702, %v704
    %v706 = vadd.f32 %v702, %v705
    %vm707 = vweird.f32 %v701
    %vm708 = vweird.f32 %v702
    %vm709 = vmor %vm707, %vm708
    %v710 = vsel %vm709, %v702, %v706
    %v711 = vand.u32 2147483647, %v701
    %vm712 = vcmp.eq.f32.partialorder %v711, 8.507059e+37
    %v713 = vand.u32 %v701, 2147483648
    %v714 = vor.u32 1.1754944e-38, %v713
    %v715 = vsel %vm712, %v714, %v710
    %v716 = vmul.f32 1.0, %v715
    %v717 = vadd.f32 %v692, %v221
    %v719 = vrot.slane %v717, 2
    %720 = vrot.lane.b32.xlu0 %v719, 64
    %v721 = vpop.permute.xlu0 %720
    %v723 = vmul.f32 %v716, %v721
    %725 = vrot.lane.b32.xlu0 %v723, 64
    %v726 = vpop.permute.xlu0 %725
    %v728 = vadd.f32 %v143, %v726
    %v729 = vtanh.pop %v728
    %v730 = vsub.f32 1.0, %v716
    %732 = vrot.lane.b32.xlu0 %v729, 96
    %v733 = vpop.permute.xlu0 %732
    %v735 = vmul.f32 %v730, %v733
    %v736 = vrot.slane %v667, 6
    %v738 = vmul.f32 %v716, %v736
    %v739 = vadd.f32 %v735, %v738
    %v741 = vrot.slane %v739, 6
    %742 = vrot.lane.b32.xlu0 %v741, 96
    %v743 = vpop.permute.xlu0 %742
    %v744 = vsel %vm174, %v743, 0
    %746 = vmatpush.msra.mxu0 0.0
    %747 = vmatpush.msra.mxu0 0.0
    %748 = vmatpush.msra.mxu0 0.0
    %749 = vmatpush.msra.mxu0 0.0
    %750 = vmatpush.msra.mxu0 0.0
    %751 = vmatpush.msra.mxu0 0.0
    %752 = vmatpush.msra.mxu0 0.0
    %753 = vmatpush.msra.mxu0 0.0
    %754 = vmatpush.msra.mxu0 0.0
    %755 = vmatpush.msra.mxu0 0.0
    %756 = vmatpush.msra.mxu0 0.0
    %757 = vmatpush.msra.mxu0 0.0
    %758 = vmatpush.msra.mxu0 %v61
    %759 = vmatpush.msra.mxu0 %v60
    %760 = vmatpush.msra.mxu0 %v59
    %761 = vmatpush.msra.mxu0 %v58
    %762 = vmatmul.f32.gmra.mxu0 %v744
    %v763 = vpop.f32.mrf.mxu0
    %v764 = vadd.f32 0.0, %v763
    %765 = vdwg.mxu0
    %v766 = vadd.f32 %v169, %v764
    %v767 = vxor.u32 %v766, 2147483648
    %v768 = vmul.f32 %v767, 1.442695
    %v769 = vpow.pop %v768
    %v770 = vadd.f32 %v769, 1.0
    %v771 = vrcp.pop %v770
    %v772 = vmul.f32 %v770, %v771
    %v773 = vsub.f32 1.0, %v772
    %v774 = vmul.f32 %v771, %v773
    %v775 = vadd.f32 %v771, %v774
    %vm776 = vweird.f32 %v770
    %vm777 = vweird.f32 %v771
    %vm778 = vmor %vm776, %vm777
    %v779 = vsel %vm778, %v771, %v775
    %v780 = vand.u32 2147483647, %v770
    %vm781 = vcmp.eq.f32.partialorder %v780, 8.507059e+37
    %v782 = vand.u32 %v770, 2147483648
    %v783 = vor.u32 1.1754944e-38, %v782
    %v784 = vsel %vm781, %v783, %v779
    %v785 = vmul.f32 1.0, %v784
    %787 = vrot.lane.b32.xlu0 %v766, 32
    %v788 = vpop.permute.xlu0 %787
    %v790 = vmul.f32 %v785, %v788
    %792 = vrot.lane.b32.xlu0 %v790, 64
    %v793 = vpop.permute.xlu0 %792
    %v795 = vadd.f32 %v766, %v793
    %v796 = vtanh.pop %v795
    %v797 = vsub.f32 1.0, %v785
    %799 = vrot.lane.b32.xlu0 %v796, 96
    %v800 = vpop.permute.xlu0 %799
    %v802 = vmul.f32 %v797, %v800
    %v804 = vmul.f32 %v785, %v741
    %v805 = vadd.f32 %v802, %v804
    %v807 = vperm.slane %v71, 0
    %810 = vrot.lane.b32.xlu0 %v805, 96
    %v811 = vpop.permute.xlu0 %810
    %v812 = vsel %vm174, %v811, 0
    %814 = vmatpush.msra.mxu0 0.0
    %815 = vmatpush.msra.mxu0 0.0
    %816 = vmatpush.msra.mxu0 0.0
    %817 = vmatpush.msra.mxu0 0.0
    %818 = vmatpush.msra.mxu0 0.0
    %819 = vmatpush.msra.mxu0 0.0
    %820 = vmatpush.msra.mxu0 0.0
    %821 = vmatpush.msra.mxu0 0.0
    %822 = vmatpush.msra.mxu0 0.0
    %823 = vmatpush.msra.mxu0 0.0
    %824 = vmatpush.msra.mxu0 0.0
    %825 = vmatpush.msra.mxu0 0.0
    %826 = vmatpush.msra.mxu0 %v65
    %827 = vmatpush.msra.mxu0 %v64
    %828 = vmatpush.msra.mxu0 %v63
    %829 = vmatpush.msra.mxu0 %v62
    %830 = vmatmul.f32.gmra.mxu0 %v812
    %v831 = vpop.f32.mrf.mxu0
    %v832 = vadd.f32 %v807, %v831
    %833 = vdwg.mxu0
    %v834 = vmax.f32 %v832, 0.0
    %v836 = vperm.slane %v72, 0
    %vm838 = vcmask 64512
    %v840 = vsel %vm838, %v834, 0
    %842 = vmatpush.msra.mxu0 0.0
    %843 = vmatpush.msra.mxu0 0.0
    %844 = vmatpush.msra.mxu0 0.0
    %845 = vmatpush.msra.mxu0 0.0
    %846 = vmatpush.msra.mxu0 0.0
    %847 = vmatpush.msra.mxu0 0.0
    %848 = vmatpush.msra.mxu0 0.0
    %849 = vmatpush.msra.mxu0 0.0
    %850 = vmatpush.msra.mxu0 0.0
    %851 = vmatpush.msra.mxu0 0.0
    %852 = vmatpush.msra.mxu0 0.0
    %853 = vmatpush.msra.mxu0 0.0
    %854 = vmatpush.msra.mxu0 0.0
    %855 = vmatpush.msra.mxu0 0.0
    %856 = vmatpush.msra.mxu0 0.0
    %857 = vmatpush.msra.mxu0 %v66
    %858 = vmatmul.f32.gmra.mxu0 %v840
    %v859 = vpop.f32.mrf.mxu0
    %v860 = vadd.f32 %v836, %v859
    %861 = vdwg.mxu0
    %v862 = vadd.f32 %v860, %v48
    %v864 = vsel %vm76, %v862, 0
    %866 = vmatpush.msra.mxu0 0.0
    %867 = vmatpush.msra.mxu0 0.0
    %868 = vmatpush.msra.mxu0 0.0
    %869 = vmatpush.msra.mxu0 0.0
    %870 = vmatpush.msra.mxu0 0.0
    %871 = vmatpush.msra.mxu0 0.0
    %872 = vmatpush.msra.mxu0 0.0
    %873 = vmatpush.msra.mxu0 0.0
    %874 = vmatpush.msra.mxu0 0.0
    %875 = vmatpush.msra.mxu0 0.0
    %876 = vmatpush.msra.mxu0 0.0
    %877 = vmatpush.msra.mxu0 0.0
    %878 = vmatpush.msra.mxu0 0.0
    %879 = vmatpush.msra.mxu0 0.0
    %880 = vmatpush.msra.mxu0 0.0
    %881 = vmatpush.msra.mxu0 %v149
    %882 = vmatmul.f32.gmra.mxu0 %v864
    %v883 = vpop.f32.mrf.mxu0
    %v884 = vadd.f32 %v146, %v883
    %885 = vdwg.mxu0
    %886 = vmatpush.msra.mxu0 0.0
    %887 = vmatpush.msra.mxu0 0.0
    %888 = vmatpush.msra.mxu0 0.0
    %889 = vmatpush.msra.mxu0 0.0
    %890 = vmatpush.msra.mxu0 0.0
    %891 = vmatpush.msra.mxu0 0.0
    %892 = vmatpush.msra.mxu0 0.0
    %893 = vmatpush.msra.mxu0 0.0
    %894 = vmatpush.msra.mxu0 0.0
    %895 = vmatpush.msra.mxu0 0.0
    %896 = vmatpush.msra.mxu0 0.0
    %897 = vmatpush.msra.mxu0 0.0
    %898 = vmatpush.msra.mxu0 %v61
    %899 = vmatpush.msra.mxu0 %v60
    %900 = vmatpush.msra.mxu0 %v59
    %901 = vmatpush.msra.mxu0 %v58
    %902 = vmatmul.f32.gmra.mxu0 %v812
    %v903 = vpop.f32.mrf.mxu0
    %v904 = vadd.f32 0.0, %v903
    %905 = vdwg.mxu0
    %v906 = vadd.f32 %v884, %v904
    %v907 = vxor.u32 %v906, 2147483648
    %v908 = vmul.f32 %v907, 1.442695
    %v909 = vpow.pop %v908
    %v910 = vadd.f32 %v909, 1.0
    %v911 = vrcp.pop %v910
    %v912 = vmul.f32 %v910, %v911
    %v913 = vsub.f32 1.0, %v912
    %v914 = vmul.f32 %v911, %v913
    %v915 = vadd.f32 %v911, %v914
    %vm916 = vweird.f32 %v910
    %vm917 = vweird.f32 %v911
    %vm918 = vmor %vm916, %vm917
    %v919 = vsel %vm918, %v911, %v915
    %v920 = vand.u32 2147483647, %v910
    %vm921 = vcmp.eq.f32.partialorder %v920, 8.507059e+37
    %v922 = vand.u32 %v910, 2147483648
    %v923 = vor.u32 1.1754944e-38, %v922
    %v924 = vsel %vm921, %v923, %v919
    %v925 = vmul.f32 1.0, %v924
    %927 = vrot.lane.b32.xlu0 %v906, 32
    %v928 = vpop.permute.xlu0 %927
    %v930 = vmul.f32 %v925, %v928
    %932 = vrot.lane.b32.xlu0 %v930, 64
    %v933 = vpop.permute.xlu0 %932
    %v935 = vadd.f32 %v906, %v933
    %v936 = vtanh.pop %v935
    %v937 = vsub.f32 1.0, %v925
    %939 = vrot.lane.b32.xlu0 %v936, 96
    %v940 = vpop.permute.xlu0 %939
    %v942 = vmul.f32 %v937, %v940
    %v943 = vmul.f32 %v925, %v805
    %v944 = vadd.f32 %v942, %v943
    %946 = vrot.lane.b32.xlu0 %v944, 96
    %v947 = vpop.permute.xlu0 %946
    %v948 = vsel %vm174, %v947, 0
    %950 = vmatpush.msra.mxu0 0.0
    %951 = vmatpush.msra.mxu0 0.0
    %952 = vmatpush.msra.mxu0 0.0
    %953 = vmatpush.msra.mxu0 0.0
    %954 = vmatpush.msra.mxu0 0.0
    %955 = vmatpush.msra.mxu0 0.0
    %956 = vmatpush.msra.mxu0 0.0
    %957 = vmatpush.msra.mxu0 0.0
    %958 = vmatpush.msra.mxu0 0.0
    %959 = vmatpush.msra.mxu0 0.0
    %960 = vmatpush.msra.mxu0 0.0
    %961 = vmatpush.msra.mxu0 0.0
    %962 = vmatpush.msra.mxu0 %v65
    %963 = vmatpush.msra.mxu0 %v64
    %964 = vmatpush.msra.mxu0 %v63
    %965 = vmatpush.msra.mxu0 %v62
    %966 = vmatmul.f32.gmra.mxu0 %v948
    %v967 = vpop.f32.mrf.mxu0
    %v968 = vadd.f32 %v807, %v967
    %969 = vdwg.mxu0
    %v970 = vmax.f32 %v968, 0.0
    %v972 = vsel %vm838, %v970, 0
    %974 = vmatpush.msra.mxu0 0.0
    %975 = vmatpush.msra.mxu0 0.0
    %976 = vmatpush.msra.mxu0 0.0
    %977 = vmatpush.msra.mxu0 0.0
    %978 = vmatpush.msra.mxu0 0.0
    %979 = vmatpush.msra.mxu0 0.0
    %980 = vmatpush.msra.mxu0 0.0
    %981 = vmatpush.msra.mxu0 0.0
    %982 = vmatpush.msra.mxu0 0.0
    %983 = vmatpush.msra.mxu0 0.0
    %984 = vmatpush.msra.mxu0 0.0
    %985 = vmatpush.msra.mxu0 0.0
    %986 = vmatpush.msra.mxu0 0.0
    %987 = vmatpush.msra.mxu0 0.0
    %988 = vmatpush.msra.mxu0 0.0
    %989 = vmatpush.msra.mxu0 %v66
    %990 = vmatmul.f32.gmra.mxu0 %v972
    %v991 = vpop.f32.mrf.mxu0
    %v992 = vadd.f32 %v836, %v991
    %993 = vdwg.mxu0
    %v994 = vadd.f32 %v992, %v862
    %v996 = vsel %vm76, %v994, 0
    %998 = vmatpush.msra.mxu0 0.0
    %999 = vmatpush.msra.mxu0 0.0
    %1000 = vmatpush.msra.mxu0 0.0
    %1001 = vmatpush.msra.mxu0 0.0
    %1002 = vmatpush.msra.mxu0 0.0
    %1003 = vmatpush.msra.mxu0 0.0
    %1004 = vmatpush.msra.mxu0 0.0
    %1005 = vmatpush.msra.mxu0 0.0
    %1006 = vmatpush.msra.mxu0 0.0
    %1007 = vmatpush.msra.mxu0 0.0
    %1008 = vmatpush.msra.mxu0 0.0
    %1009 = vmatpush.msra.mxu0 0.0
    %1010 = vmatpush.msra.mxu0 0.0
    %1011 = vmatpush.msra.mxu0 0.0
    %1012 = vmatpush.msra.mxu0 0.0
    %1013 = vmatpush.msra.mxu0 %v149
    %1014 = vmatmul.f32.gmra.mxu0 %v996
    %v1015 = vpop.f32.mrf.mxu0
    %v1016 = vadd.f32 %v146, %v1015
    %1017 = vdwg.mxu0
    %1018 = vmatpush.msra.mxu0 0.0
    %1019 = vmatpush.msra.mxu0 0.0
    %1020 = vmatpush.msra.mxu0 0.0
    %1021 = vmatpush.msra.mxu0 0.0
    %1022 = vmatpush.msra.mxu0 0.0
    %1023 = vmatpush.msra.mxu0 0.0
    %1024 = vmatpush.msra.mxu0 0.0
    %1025 = vmatpush.msra.mxu0 0.0
    %1026 = vmatpush.msra.mxu0 0.0
    %1027 = vmatpush.msra.mxu0 0.0
    %1028 = vmatpush.msra.mxu0 0.0
    %1029 = vmatpush.msra.mxu0 0.0
    %1030 = vmatpush.msra.mxu0 %v61
    %1031 = vmatpush.msra.mxu0 %v60
    %1032 = vmatpush.msra.mxu0 %v59
    %1033 = vmatpush.msra.mxu0 %v58
    %1034 = vmatmul.f32.gmra.mxu0 %v948
    %v1035 = vpop.f32.mrf.mxu0
    %v1036 = vadd.f32 0.0, %v1035
    %1037 = vdwg.mxu0
    %v1038 = vadd.f32 %v1016, %v1036
    %v1039 = vxor.u32 %v1038, 2147483648
    %v1040 = vmul.f32 %v1039, 1.442695
    %v1041 = vpow.pop %v1040
    %v1042 = vadd.f32 %v1041, 1.0
    %v1043 = vrcp.pop %v1042
    %v1044 = vmul.f32 %v1042, %v1043
    %v1045 = vsub.f32 1.0, %v1044
    %v1046 = vmul.f32 %v1043, %v1045
    %v1047 = vadd.f32 %v1043, %v1046
    %vm1048 = vweird.f32 %v1042
    %vm1049 = vweird.f32 %v1043
    %vm1050 = vmor %vm1048, %vm1049
    %v1051 = vsel %vm1050, %v1043, %v1047
    %v1052 = vand.u32 2147483647, %v1042
    %vm1053 = vcmp.eq.f32.partialorder %v1052, 8.507059e+37
    %v1054 = vand.u32 %v1042, 2147483648
    %v1055 = vor.u32 1.1754944e-38, %v1054
    %v1056 = vsel %vm1053, %v1055, %v1051
    %v1057 = vmul.f32 1.0, %v1056
    %1059 = vrot.lane.b32.xlu0 %v1038, 32
    %v1060 = vpop.permute.xlu0 %1059
    %v1062 = vmul.f32 %v1057, %v1060
    %1064 = vrot.lane.b32.xlu0 %v1062, 64
    %v1065 = vpop.permute.xlu0 %1064
    %v1067 = vadd.f32 %v1038, %v1065
    %v1068 = vtanh.pop %v1067
    %v1069 = vsub.f32 1.0, %v1057
    %1071 = vrot.lane.b32.xlu0 %v1068, 96
    %v1072 = vpop.permute.xlu0 %1071
    %v1074 = vmul.f32 %v1069, %v1072
    %v1075 = vmul.f32 %v1057, %v944
    %v1076 = vadd.f32 %v1074, %v1075
    %1078 = vrot.lane.b32.xlu0 %v1076, 96
    %v1079 = vpop.permute.xlu0 %1078
    %v1080 = vsel %vm174, %v1079, 0
    %1082 = vmatpush.msra.mxu0 0.0
    %1083 = vmatpush.msra.mxu0 0.0
    %1084 = vmatpush.msra.mxu0 0.0
    %1085 = vmatpush.msra.mxu0 0.0
    %1086 = vmatpush.msra.mxu0 0.0
    %1087 = vmatpush.msra.mxu0 0.0
    %1088 = vmatpush.msra.mxu0 0.0
    %1089 = vmatpush.msra.mxu0 0.0
    %1090 = vmatpush.msra.mxu0 0.0
    %1091 = vmatpush.msra.mxu0 0.0
    %1092 = vmatpush.msra.mxu0 0.0
    %1093 = vmatpush.msra.mxu0 0.0
    %1094 = vmatpush.msra.mxu0 %v65
    %1095 = vmatpush.msra.mxu0 %v64
    %1096 = vmatpush.msra.mxu0 %v63
    %1097 = vmatpush.msra.mxu0 %v62
    %1098 = vmatmul.f32.gmra.mxu0 %v1080
    %v1099 = vpop.f32.mrf.mxu0
    %v1100 = vadd.f32 %v807, %v1099
    %1101 = vdwg.mxu0
    %v1102 = vmax.f32 %v1100, 0.0
    %v1104 = vsel %vm838, %v1102, 0
    %1106 = vmatpush.msra.mxu0 0.0
    %1107 = vmatpush.msra.mxu0 0.0
    %1108 = vmatpush.msra.mxu0 0.0
    %1109 = vmatpush.msra.mxu0 0.0
    %1110 = vmatpush.msra.mxu0 0.0
    %1111 = vmatpush.msra.mxu0 0.0
    %1112 = vmatpush.msra.mxu0 0.0
    %1113 = vmatpush.msra.mxu0 0.0
    %1114 = vmatpush.msra.mxu0 0.0
    %1115 = vmatpush.msra.mxu0 0.0
    %1116 = vmatpush.msra.mxu0 0.0
    %1117 = vmatpush.msra.mxu0 0.0
    %1118 = vmatpush.msra.mxu0 0.0
    %1119 = vmatpush.msra.mxu0 0.0
    %1120 = vmatpush.msra.mxu0 0.0
    %1121 = vmatpush.msra.mxu0 %v66
    %1122 = vmatmul.f32.gmra.mxu0 %v1104
    %v1123 = vpop.f32.mrf.mxu0
    %v1124 = vadd.f32 %v836, %v1123
    %1125 = vdwg.mxu0
    %v1126 = vadd.f32 %v1124, %v994
    %v1128 = vsel %vm76, %v1126, 0
    %1130 = vmatpush.msra.mxu0 0.0
    %1131 = vmatpush.msra.mxu0 0.0
    %1132 = vmatpush.msra.mxu0 0.0
    %1133 = vmatpush.msra.mxu0 0.0
    %1134 = vmatpush.msra.mxu0 0.0
    %1135 = vmatpush.msra.mxu0 0.0
    %1136 = vmatpush.msra.mxu0 0.0
    %1137 = vmatpush.msra.mxu0 0.0
    %1138 = vmatpush.msra.mxu0 0.0
    %1139 = vmatpush.msra.mxu0 0.0
    %1140 = vmatpush.msra.mxu0 0.0
    %1141 = vmatpush.msra.mxu0 0.0
    %1142 = vmatpush.msra.mxu0 0.0
    %1143 = vmatpush.msra.mxu0 0.0
    %1144 = vmatpush.msra.mxu0 0.0
    %1145 = vmatpush.msra.mxu0 %v149
    %1146 = vmatmul.f32.gmra.mxu0 %v1128
    %v1147 = vpop.f32.mrf.mxu0
    %v1148 = vadd.f32 %v146, %v1147
    %1149 = vdwg.mxu0
    %1150 = vmatpush.msra.mxu0 0.0
    %1151 = vmatpush.msra.mxu0 0.0
    %1152 = vmatpush.msra.mxu0 0.0
    %1153 = vmatpush.msra.mxu0 0.0
    %1154 = vmatpush.msra.mxu0 0.0
    %1155 = vmatpush.msra.mxu0 0.0
    %1156 = vmatpush.msra.mxu0 0.0
    %1157 = vmatpush.msra.mxu0 0.0
    %1158 = vmatpush.msra.mxu0 0.0
    %1159 = vmatpush.msra.mxu0 0.0
    %1160 = vmatpush.msra.mxu0 0.0
    %1161 = vmatpush.msra.mxu0 0.0
    %1162 = vmatpush.msra.mxu0 %v61
    %1163 = vmatpush.msra.mxu0 %v60
    %1164 = vmatpush.msra.mxu0 %v59
    %1165 = vmatpush.msra.mxu0 %v58
    %1166 = vmatmul.f32.gmra.mxu0 %v1080
    %v1167 = vpop.f32.mrf.mxu0
    %v1168 = vadd.f32 0.0, %v1167
    %1169 = vdwg.mxu0
    %v1170 = vadd.f32 %v1148, %v1168
    %v1171 = vxor.u32 %v1170, 2147483648
    %v1172 = vmul.f32 %v1171, 1.442695
    %v1173 = vpow.pop %v1172
    %v1174 = vadd.f32 %v1173, 1.0
    %v1175 = vrcp.pop %v1174
    %v1176 = vmul.f32 %v1174, %v1175
    %v1177 = vsub.f32 1.0, %v1176
    %v1178 = vmul.f32 %v1175, %v1177
    %v1179 = vadd.f32 %v1175, %v1178
    %vm1180 = vweird.f32 %v1174
    %vm1181 = vweird.f32 %v1175
    %vm1182 = vmor %vm1180, %vm1181
    %v1183 = vsel %vm1182, %v1175, %v1179
    %v1184 = vand.u32 2147483647, %v1174
    %vm1185 = vcmp.eq.f32.partialorder %v1184, 8.507059e+37
    %v1186 = vand.u32 %v1174, 2147483648
    %v1187 = vor.u32 1.1754944e-38, %v1186
    %v1188 = vsel %vm1185, %v1187, %v1183
    %v1189 = vmul.f32 1.0, %v1188
    %1191 = vrot.lane.b32.xlu0 %v1170, 32
    %v1192 = vpop.permute.xlu0 %1191
    %v1194 = vmul.f32 %v1189, %v1192
    %1196 = vrot.lane.b32.xlu0 %v1194, 64
    %v1197 = vpop.permute.xlu0 %1196
    %v1199 = vadd.f32 %v1170, %v1197
    %v1200 = vtanh.pop %v1199
    %v1201 = vsub.f32 1.0, %v1189
    %1203 = vrot.lane.b32.xlu0 %v1200, 96
    %v1204 = vpop.permute.xlu0 %1203
    %v1206 = vmul.f32 %v1201, %v1204
    %v1207 = vmul.f32 %v1189, %v1076
    %v1208 = vadd.f32 %v1206, %v1207
    %1210 = vrot.lane.b32.xlu0 %v1208, 96
    %v1211 = vpop.permute.xlu0 %1210
    %v1212 = vsel %vm174, %v1211, 0
    %1214 = vmatpush.msra.mxu0 0.0
    %1215 = vmatpush.msra.mxu0 0.0
    %1216 = vmatpush.msra.mxu0 0.0
    %1217 = vmatpush.msra.mxu0 0.0
    %1218 = vmatpush.msra.mxu0 0.0
    %1219 = vmatpush.msra.mxu0 0.0
    %1220 = vmatpush.msra.mxu0 0.0
    %1221 = vmatpush.msra.mxu0 0.0
    %1222 = vmatpush.msra.mxu0 0.0
    %1223 = vmatpush.msra.mxu0 0.0
    %1224 = vmatpush.msra.mxu0 0.0
    %1225 = vmatpush.msra.mxu0 0.0
    %1226 = vmatpush.msra.mxu0 %v65
    %1227 = vmatpush.msra.mxu0 %v64
    %1228 = vmatpush.msra.mxu0 %v63
    %1229 = vmatpush.msra.mxu0 %v62
    %1230 = vmatmul.f32.gmra.mxu0 %v1212
    %v1231 = vpop.f32.mrf.mxu0
    %v1232 = vadd.f32 %v807, %v1231
    %1233 = vdwg.mxu0
    %v1234 = vmax.f32 %v1232, 0.0
    %v1236 = vsel %vm838, %v1234, 0
    %1238 = vmatpush.msra.mxu0 0.0
    %1239 = vmatpush.msra.mxu0 0.0
    %1240 = vmatpush.msra.mxu0 0.0
    %1241 = vmatpush.msra.mxu0 0.0
    %1242 = vmatpush.msra.mxu0 0.0
    %1243 = vmatpush.msra.mxu0 0.0
    %1244 = vmatpush.msra.mxu0 0.0
    %1245 = vmatpush.msra.mxu0 0.0
    %1246 = vmatpush.msra.mxu0 0.0
    %1247 = vmatpush.msra.mxu0 0.0
    %1248 = vmatpush.msra.mxu0 0.0
    %1249 = vmatpush.msra.mxu0 0.0
    %1250 = vmatpush.msra.mxu0 0.0
    %1251 = vmatpush.msra.mxu0 0.0
    %1252 = vmatpush.msra.mxu0 0.0
    %1253 = vmatpush.msra.mxu0 %v66
    %1254 = vmatmul.f32.gmra.mxu0 %v1236
    %v1255 = vpop.f32.mrf.mxu0
    %v1256 = vadd.f32 %v836, %v1255
    %1257 = vdwg.mxu0
    %v1258 = vadd.f32 %v1256, %v1126
    %v1260 = vsel %vm76, %v1258, 0
    %1262 = vmatpush.msra.mxu0 0.0
    %1263 = vmatpush.msra.mxu0 0.0
    %1264 = vmatpush.msra.mxu0 0.0
    %1265 = vmatpush.msra.mxu0 0.0
    %1266 = vmatpush.msra.mxu0 0.0
    %1267 = vmatpush.msra.mxu0 0.0
    %1268 = vmatpush.msra.mxu0 0.0
    %1269 = vmatpush.msra.mxu0 0.0
    %1270 = vmatpush.msra.mxu0 0.0
    %1271 = vmatpush.msra.mxu0 0.0
    %1272 = vmatpush.msra.mxu0 0.0
    %1273 = vmatpush.msra.mxu0 0.0
    %1274 = vmatpush.msra.mxu0 0.0
    %1275 = vmatpush.msra.mxu0 0.0
    %1276 = vmatpush.msra.mxu0 0.0
    %1277 = vmatpush.msra.mxu0 %v149
    %1278 = vmatmul.f32.gmra.mxu0 %v1260
    %v1279 = vpop.f32.mrf.mxu0
    %v1280 = vadd.f32 %v146, %v1279
    %1281 = vdwg.mxu0
    %1282 = vmatpush.msra.mxu0 0.0
    %1283 = vmatpush.msra.mxu0 0.0
    %1284 = vmatpush.msra.mxu0 0.0
    %1285 = vmatpush.msra.mxu0 0.0
    %1286 = vmatpush.msra.mxu0 0.0
    %1287 = vmatpush.msra.mxu0 0.0
    %1288 = vmatpush.msra.mxu0 0.0
    %1289 = vmatpush.msra.mxu0 0.0
    %1290 = vmatpush.msra.mxu0 0.0
    %1291 = vmatpush.msra.mxu0 0.0
    %1292 = vmatpush.msra.mxu0 0.0
    %1293 = vmatpush.msra.mxu0 0.0
    %1294 = vmatpush.msra.mxu0 %v61
    %1295 = vmatpush.msra.mxu0 %v60
    %1296 = vmatpush.msra.mxu0 %v59
    %1297 = vmatpush.msra.mxu0 %v58
    %1298 = vmatmul.f32.gmra.mxu0 %v1212
    %v1299 = vpop.f32.mrf.mxu0
    %v1300 = vadd.f32 0.0, %v1299
    %1301 = vdwg.mxu0
    %v1302 = vadd.f32 %v1280, %v1300
    %v1303 = vxor.u32 %v1302, 2147483648
    %v1304 = vmul.f32 %v1303, 1.442695
    %v1305 = vpow.pop %v1304
    %v1306 = vadd.f32 %v1305, 1.0
    %v1307 = vrcp.pop %v1306
    %v1308 = vmul.f32 %v1306, %v1307
    %v1309 = vsub.f32 1.0, %v1308
    %v1310 = vmul.f32 %v1307, %v1309
    %v1311 = vadd.f32 %v1307, %v1310
    %vm1312 = vweird.f32 %v1306
    %vm1313 = vweird.f32 %v1307
    %vm1314 = vmor %vm1312, %vm1313
    %v1315 = vsel %vm1314, %v1307, %v1311
    %v1316 = vand.u32 2147483647, %v1306
    %vm1317 = vcmp.eq.f32.partialorder %v1316, 8.507059e+37
    %v1318 = vand.u32 %v1306, 2147483648
    %v1319 = vor.u32 1.1754944e-38, %v1318
    %v1320 = vsel %vm1317, %v1319, %v1315
    %v1321 = vmul.f32 1.0, %v1320
    %1323 = vrot.lane.b32.xlu0 %v1302, 32
    %v1324 = vpop.permute.xlu0 %1323
    %v1326 = vmul.f32 %v1321, %v1324
    %1328 = vrot.lane.b32.xlu0 %v1326, 64
    %v1329 = vpop.permute.xlu0 %1328
    %v1331 = vadd.f32 %v1302, %v1329
    %v1332 = vtanh.pop %v1331
    %v1333 = vsub.f32 1.0, %v1321
    %1335 = vrot.lane.b32.xlu0 %v1332, 96
    %v1336 = vpop.permute.xlu0 %1335
    %v1338 = vmul.f32 %v1333, %v1336
    %v1339 = vmul.f32 %v1321, %v1208
    %v1340 = vadd.f32 %v1338, %v1339
    %1342 = vrot.lane.b32.xlu0 %v1340, 96
    %v1343 = vpop.permute.xlu0 %1342
    %v1344 = vsel %vm174, %v1343, 0
    %1346 = vmatpush.msra.mxu0 0.0
    %1347 = vmatpush.msra.mxu0 0.0
    %1348 = vmatpush.msra.mxu0 0.0
    %1349 = vmatpush.msra.mxu0 0.0
    %1350 = vmatpush.msra.mxu0 0.0
    %1351 = vmatpush.msra.mxu0 0.0
    %1352 = vmatpush.msra.mxu0 0.0
    %1353 = vmatpush.msra.mxu0 0.0
    %1354 = vmatpush.msra.mxu0 0.0
    %1355 = vmatpush.msra.mxu0 0.0
    %1356 = vmatpush.msra.mxu0 0.0
    %1357 = vmatpush.msra.mxu0 0.0
    %1358 = vmatpush.msra.mxu0 %v65
    %1359 = vmatpush.msra.mxu0 %v64
    %1360 = vmatpush.msra.mxu0 %v63
    %1361 = vmatpush.msra.mxu0 %v62
    %1362 = vmatmul.f32.gmra.mxu0 %v1344
    %v1363 = vpop.f32.mrf.mxu0
    %v1364 = vadd.f32 %v807, %v1363
    %1365 = vdwg.mxu0
    %v1366 = vmax.f32 %v1364, 0.0
    %v1368 = vsel %vm838, %v1366, 0
    %1370 = vmatpush.msra.mxu0 0.0
    %1371 = vmatpush.msra.mxu0 0.0
    %1372 = vmatpush.msra.mxu0 0.0
    %1373 = vmatpush.msra.mxu0 0.0
    %1374 = vmatpush.msra.mxu0 0.0
    %1375 = vmatpush.msra.mxu0 0.0
    %1376 = vmatpush.msra.mxu0 0.0
    %1377 = vmatpush.msra.mxu0 0.0
    %1378 = vmatpush.msra.mxu0 0.0
    %1379 = vmatpush.msra.mxu0 0.0
    %1380 = vmatpush.msra.mxu0 0.0
    %1381 = vmatpush.msra.mxu0 0.0
    %1382 = vmatpush.msra.mxu0 0.0
    %1383 = vmatpush.msra.mxu0 0.0
    %1384 = vmatpush.msra.mxu0 0.0
    %1385 = vmatpush.msra.mxu0 %v66
    %1386 = vmatmul.f32.gmra.mxu0 %v1368
    %v1387 = vpop.f32.mrf.mxu0
    %v1388 = vadd.f32 %v836, %v1387
    %1389 = vdwg.mxu0
    %v1390 = vadd.f32 %v1388, %v1258
    %1391 = vmatpush.msra.mxu0 0.0
    %1392 = vmatpush.msra.mxu0 0.0
    %1393 = vmatpush.msra.mxu0 0.0
    %1394 = vmatpush.msra.mxu0 0.0
    %1395 = vmatpush.msra.mxu0 0.0
    %1396 = vmatpush.msra.mxu0 0.0
    %1397 = vmatpush.msra.mxu0 0.0
    %1398 = vmatpush.msra.mxu0 0.0
    %1399 = vmatpush.msra.mxu0 0.0
    %1400 = vmatpush.msra.mxu0 0.0
    %1401 = vmatpush.msra.mxu0 0.0
    %1402 = vmatpush.msra.mxu0 0.0
    %1403 = vmatpush.msra.mxu0 %v61
    %1404 = vmatpush.msra.mxu0 %v60
    %1405 = vmatpush.msra.mxu0 %v59
    %1406 = vmatpush.msra.mxu0 %v58
    %1407 = vmatmul.f32.gmra.mxu0 %v1344
    %v1408 = vpop.f32.mrf.mxu0
    %v1409 = vadd.f32 0.0, %v1408
    %1410 = vdwg.mxu0
    %v1412 = vrot.slane %v1409, 6
    %v1414 = vadd.f32 %v172, %v1412
    %v1415 = vxor.u32 %v1414, 2147483648
    %v1416 = vmul.f32 %v1415, 1.442695
    %v1417 = vpow.pop %v1416
    %v1418 = vadd.f32 %v1417, 1.0
    %v1419 = vrcp.pop %v1418
    %v1420 = vmul.f32 %v1418, %v1419
    %v1421 = vsub.f32 1.0, %v1420
    %v1422 = vmul.f32 %v1419, %v1421
    %v1423 = vadd.f32 %v1419, %v1422
    %vm1424 = vweird.f32 %v1418
    %vm1425 = vweird.f32 %v1419
    %vm1426 = vmor %vm1424, %vm1425
    %v1427 = vsel %vm1426, %v1419, %v1423
    %v1428 = vand.u32 2147483647, %v1418
    %vm1429 = vcmp.eq.f32.partialorder %v1428, 8.507059e+37
    %v1430 = vand.u32 %v1418, 2147483648
    %v1431 = vor.u32 1.1754944e-38, %v1430
    %v1432 = vsel %vm1429, %v1431, %v1427
    %v1433 = vmul.f32 1.0, %v1432
    %1435 = vrot.lane.b32.xlu0 %v1414, 32
    %v1436 = vpop.permute.xlu0 %1435
    %v1438 = vmul.f32 %v1433, %v1436
    %1440 = vrot.lane.b32.xlu0 %v1438, 64
    %v1441 = vpop.permute.xlu0 %1440
    %v1443 = vadd.f32 %v1414, %v1441
    %v1444 = vtanh.pop %v1443
    %v1445 = vsub.f32 1.0, %v1433
    %1447 = vrot.lane.b32.xlu0 %v1444, 96
    %v1448 = vpop.permute.xlu0 %1447
    %v1450 = vmul.f32 %v1445, %v1448
    %v1451 = vrot.slane %v1340, 6
    %v1453 = vmul.f32 %v1433, %v1451
    %v1454 = vadd.f32 %v1450, %v1453
    %v1456 = vrot.slane %v1454, 2
    %1457 = vrot.lane.b32.xlu0 %v1456, 96
    %v1458 = vpop.permute.xlu0 %1457
    %v1459 = vsel %vm174, %v1458, 0
    %1461 = vmatpush.msra.mxu0 0.0
    %1462 = vmatpush.msra.mxu0 0.0
    %1463 = vmatpush.msra.mxu0 0.0
    %1464 = vmatpush.msra.mxu0 0.0
    %1465 = vmatpush.msra.mxu0 0.0
    %1466 = vmatpush.msra.mxu0 0.0
    %1467 = vmatpush.msra.mxu0 0.0
    %1468 = vmatpush.msra.mxu0 0.0
    %1469 = vmatpush.msra.mxu0 0.0
    %1470 = vmatpush.msra.mxu0 0.0
    %1471 = vmatpush.msra.mxu0 0.0
    %1472 = vmatpush.msra.mxu0 0.0
    %1473 = vmatpush.msra.mxu0 %v65
    %1474 = vmatpush.msra.mxu0 %v64
    %1475 = vmatpush.msra.mxu0 %v63
    %1476 = vmatpush.msra.mxu0 %v62
    %1477 = vmatmul.f32.gmra.mxu0 %v1459
    %v1478 = vpop.f32.mrf.mxu0
    %v1479 = vadd.f32 %v807, %v1478
    %1480 = vdwg.mxu0
    %v1481 = vmax.f32 %v1479, 0.0
    %v1483 = vsel %vm838, %v1481, 0
    %1485 = vmatpush.msra.mxu0 0.0
    %1486 = vmatpush.msra.mxu0 0.0
    %1487 = vmatpush.msra.mxu0 0.0
    %1488 = vmatpush.msra.mxu0 0.0
    %1489 = vmatpush.msra.mxu0 0.0
    %1490 = vmatpush.msra.mxu0 0.0
    %1491 = vmatpush.msra.mxu0 0.0
    %1492 = vmatpush.msra.mxu0 0.0
    %1493 = vmatpush.msra.mxu0 0.0
    %1494 = vmatpush.msra.mxu0 0.0
    %1495 = vmatpush.msra.mxu0 0.0
    %1496 = vmatpush.msra.mxu0 0.0
    %1497 = vmatpush.msra.mxu0 0.0
    %1498 = vmatpush.msra.mxu0 0.0
    %1499 = vmatpush.msra.mxu0 0.0
    %1500 = vmatpush.msra.mxu0 %v66
    %1501 = vmatmul.f32.gmra.mxu0 %v1483
    %v1502 = vpop.f32.mrf.mxu0
    %v1503 = vadd.f32 %v836, %v1502
    %1504 = vdwg.mxu0
    %v1505 = vadd.f32 %v1503, %v1390
    %v1507 = vsel %vm76, %v1505, 0
    %1509 = vmatpush.msra.mxu0 0.0
    %1510 = vmatpush.msra.mxu0 0.0
    %1511 = vmatpush.msra.mxu0 0.0
    %1512 = vmatpush.msra.mxu0 0.0
    %1513 = vmatpush.msra.mxu0 0.0
    %1514 = vmatpush.msra.mxu0 0.0
    %1515 = vmatpush.msra.mxu0 0.0
    %1516 = vmatpush.msra.mxu0 0.0
    %1517 = vmatpush.msra.mxu0 0.0
    %1518 = vmatpush.msra.mxu0 0.0
    %1519 = vmatpush.msra.mxu0 0.0
    %1520 = vmatpush.msra.mxu0 0.0
    %1521 = vmatpush.msra.mxu0 0.0
    %1522 = vmatpush.msra.mxu0 0.0
    %1523 = vmatpush.msra.mxu0 0.0
    %1524 = vmatpush.msra.mxu0 %v149
    %1525 = vmatmul.f32.gmra.mxu0 %v1507
    %v1526 = vpop.f32.mrf.mxu0
    %v1527 = vadd.f32 %v146, %v1526
    %1528 = vdwg.mxu0
    %1529 = vmatpush.msra.mxu0 0.0
    %1530 = vmatpush.msra.mxu0 0.0
    %1531 = vmatpush.msra.mxu0 0.0
    %1532 = vmatpush.msra.mxu0 0.0
    %1533 = vmatpush.msra.mxu0 0.0
    %1534 = vmatpush.msra.mxu0 0.0
    %1535 = vmatpush.msra.mxu0 0.0
    %1536 = vmatpush.msra.mxu0 0.0
    %1537 = vmatpush.msra.mxu0 0.0
    %1538 = vmatpush.msra.mxu0 0.0
    %1539 = vmatpush.msra.mxu0 0.0
    %1540 = vmatpush.msra.mxu0 0.0
    %1541 = vmatpush.msra.mxu0 %v61
    %1542 = vmatpush.msra.mxu0 %v60
    %1543 = vmatpush.msra.mxu0 %v59
    %1544 = vmatpush.msra.mxu0 %v58
    %1545 = vmatmul.f32.gmra.mxu0 %v1459
    %v1546 = vpop.f32.mrf.mxu0
    %v1547 = vadd.f32 0.0, %v1546
    %1548 = vdwg.mxu0
    %v1549 = vadd.f32 %v1527, %v1547
    %v1550 = vxor.u32 %v1549, 2147483648
    %v1551 = vmul.f32 %v1550, 1.442695
    %v1552 = vpow.pop %v1551
    %v1553 = vadd.f32 %v1552, 1.0
    %v1554 = vrcp.pop %v1553
    %v1555 = vmul.f32 %v1553, %v1554
    %v1556 = vsub.f32 1.0, %v1555
    %v1557 = vmul.f32 %v1554, %v1556
    %v1558 = vadd.f32 %v1554, %v1557
    %vm1559 = vweird.f32 %v1553
    %vm1560 = vweird.f32 %v1554
    %vm1561 = vmor %vm1559, %vm1560
    %v1562 = vsel %vm1561, %v1554, %v1558
    %v1563 = vand.u32 2147483647, %v1553
    %vm1564 = vcmp.eq.f32.partialorder %v1563, 8.507059e+37
    %v1565 = vand.u32 %v1553, 2147483648
    %v1566 = vor.u32 1.1754944e-38, %v1565
    %v1567 = vsel %vm1564, %v1566, %v1562
    %v1568 = vmul.f32 1.0, %v1567
    %1570 = vrot.lane.b32.xlu0 %v1549, 32
    %v1571 = vpop.permute.xlu0 %1570
    %v1573 = vmul.f32 %v1568, %v1571
    %1575 = vrot.lane.b32.xlu0 %v1573, 64
    %v1576 = vpop.permute.xlu0 %1575
    %v1578 = vadd.f32 %v1549, %v1576
    %v1579 = vtanh.pop %v1578
    %v1580 = vsub.f32 1.0, %v1568
    %1582 = vrot.lane.b32.xlu0 %v1579, 96
    %v1583 = vpop.permute.xlu0 %1582
    %v1585 = vmul.f32 %v1580, %v1583
    %v1587 = vmul.f32 %v1568, %v1456
    %v1588 = vadd.f32 %v1585, %v1587
    %1590 = vrot.lane.b32.xlu0 %v1588, 96
    %v1591 = vpop.permute.xlu0 %1590
    %v1592 = vsel %vm174, %v1591, 0
    %1594 = vmatpush.msra.mxu0 0.0
    %1595 = vmatpush.msra.mxu0 0.0
    %1596 = vmatpush.msra.mxu0 0.0
    %1597 = vmatpush.msra.mxu0 0.0
    %1598 = vmatpush.msra.mxu0 0.0
    %1599 = vmatpush.msra.mxu0 0.0
    %1600 = vmatpush.msra.mxu0 0.0
    %1601 = vmatpush.msra.mxu0 0.0
    %1602 = vmatpush.msra.mxu0 0.0
    %1603 = vmatpush.msra.mxu0 0.0
    %1604 = vmatpush.msra.mxu0 0.0
    %1605 = vmatpush.msra.mxu0 0.0
    %1606 = vmatpush.msra.mxu0 %v65
    %1607 = vmatpush.msra.mxu0 %v64
    %1608 = vmatpush.msra.mxu0 %v63
    %1609 = vmatpush.msra.mxu0 %v62
    %1610 = vmatmul.f32.gmra.mxu0 %v1592
    %v1611 = vpop.f32.mrf.mxu0
    %v1612 = vadd.f32 %v807, %v1611
    %1613 = vdwg.mxu0
    %v1614 = vmax.f32 %v1612, 0.0
    %v1616 = vsel %vm838, %v1614, 0
    %1618 = vmatpush.msra.mxu0 0.0
    %1619 = vmatpush.msra.mxu0 0.0
    %1620 = vmatpush.msra.mxu0 0.0
    %1621 = vmatpush.msra.mxu0 0.0
    %1622 = vmatpush.msra.mxu0 0.0
    %1623 = vmatpush.msra.mxu0 0.0
    %1624 = vmatpush.msra.mxu0 0.0
    %1625 = vmatpush.msra.mxu0 0.0
    %1626 = vmatpush.msra.mxu0 0.0
    %1627 = vmatpush.msra.mxu0 0.0
    %1628 = vmatpush.msra.mxu0 0.0
    %1629 = vmatpush.msra.mxu0 0.0
    %1630 = vmatpush.msra.mxu0 0.0
    %1631 = vmatpush.msra.mxu0 0.0
    %1632 = vmatpush.msra.mxu0 0.0
    %1633 = vmatpush.msra.mxu0 %v66
    %1634 = vmatmul.f32.gmra.mxu0 %v1616
    %v1635 = vpop.f32.mrf.mxu0
    %v1636 = vadd.f32 %v836, %v1635
    %1637 = vdwg.mxu0
    %v1638 = vadd.f32 %v1636, %v1505
    %1639 = vmatpush.msra.mxu0 0.0
    %1640 = vmatpush.msra.mxu0 0.0
    %1641 = vmatpush.msra.mxu0 0.0
    %1642 = vmatpush.msra.mxu0 0.0
    %1643 = vmatpush.msra.mxu0 0.0
    %1644 = vmatpush.msra.mxu0 0.0
    %1645 = vmatpush.msra.mxu0 0.0
    %1646 = vmatpush.msra.mxu0 0.0
    %1647 = vmatpush.msra.mxu0 0.0
    %1648 = vmatpush.msra.mxu0 0.0
    %1649 = vmatpush.msra.mxu0 0.0
    %1650 = vmatpush.msra.mxu0 0.0
    %1651 = vmatpush.msra.mxu0 %v61
    %1652 = vmatpush.msra.mxu0 %v60
    %1653 = vmatpush.msra.mxu0 %v59
    %1654 = vmatpush.msra.mxu0 %v58
    %1655 = vmatmul.f32.gmra.mxu0 %v1592
    %v1656 = vpop.f32.mrf.mxu0
    %v1657 = vadd.f32 0.0, %v1656
    %1658 = vdwg.mxu0
    %v1660 = vrot.slane %v1657, 2
    %v1662 = vadd.f32 %v172, %v1660
    %v1663 = vxor.u32 %v1662, 2147483648
    %v1664 = vmul.f32 %v1663, 1.442695
    %v1665 = vpow.pop %v1664
    %v1666 = vadd.f32 %v1665, 1.0
    %v1667 = vrcp.pop %v1666
    %v1668 = vmul.f32 %v1666, %v1667
    %v1669 = vsub.f32 1.0, %v1668
    %v1670 = vmul.f32 %v1667, %v1669
    %v1671 = vadd.f32 %v1667, %v1670
    %vm1672 = vweird.f32 %v1666
    %vm1673 = vweird.f32 %v1667
    %vm1674 = vmor %vm1672, %vm1673
    %v1675 = vsel %vm1674, %v1667, %v1671
    %v1676 = vand.u32 2147483647, %v1666
    %vm1677 = vcmp.eq.f32.partialorder %v1676, 8.507059e+37
    %v1678 = vand.u32 %v1666, 2147483648
    %v1679 = vor.u32 1.1754944e-38, %v1678
    %v1680 = vsel %vm1677, %v1679, %v1675
    %v1681 = vmul.f32 1.0, %v1680
    %1683 = vrot.lane.b32.xlu0 %v1662, 32
    %v1684 = vpop.permute.xlu0 %1683
    %v1686 = vmul.f32 %v1681, %v1684
    %1688 = vrot.lane.b32.xlu0 %v1686, 64
    %v1689 = vpop.permute.xlu0 %1688
    %v1691 = vadd.f32 %v1662, %v1689
    %v1692 = vtanh.pop %v1691
    %v1693 = vsub.f32 1.0, %v1681
    %1695 = vrot.lane.b32.xlu0 %v1692, 96
    %v1696 = vpop.permute.xlu0 %1695
    %v1698 = vmul.f32 %v1693, %v1696
    %v1699 = vrot.slane %v1588, 2
    %v1701 = vmul.f32 %v1681, %v1699
    %v1702 = vadd.f32 %v1698, %v1701
    %v1704 = vrot.slane %v1702, 6
    %1705 = vrot.lane.b32.xlu0 %v1704, 96
    %v1706 = vpop.permute.xlu0 %1705
    %v1707 = vsel %vm174, %v1706, 0
    %1709 = vmatpush.msra.mxu0 0.0
    %1710 = vmatpush.msra.mxu0 0.0
    %1711 = vmatpush.msra.mxu0 0.0
    %1712 = vmatpush.msra.mxu0 0.0
    %1713 = vmatpush.msra.mxu0 0.0
    %1714 = vmatpush.msra.mxu0 0.0
    %1715 = vmatpush.msra.mxu0 0.0
    %1716 = vmatpush.msra.mxu0 0.0
    %1717 = vmatpush.msra.mxu0 0.0
    %1718 = vmatpush.msra.mxu0 0.0
    %1719 = vmatpush.msra.mxu0 0.0
    %1720 = vmatpush.msra.mxu0 0.0
    %1721 = vmatpush.msra.mxu0 %v65
    %1722 = vmatpush.msra.mxu0 %v64
    %1723 = vmatpush.msra.mxu0 %v63
    %1724 = vmatpush.msra.mxu0 %v62
    %1725 = vmatmul.f32.gmra.mxu0 %v1707
    %v1726 = vpop.f32.mrf.mxu0
    %v1727 = vadd.f32 %v807, %v1726
    %1728 = vdwg.mxu0
    %v1729 = vmax.f32 %v1727, 0.0
    %v1731 = vsel %vm838, %v1729, 0
    %1733 = vmatpush.msra.mxu0 0.0
    %1734 = vmatpush.msra.mxu0 0.0
    %1735 = vmatpush.msra.mxu0 0.0
    %1736 = vmatpush.msra.mxu0 0.0
    %1737 = vmatpush.msra.mxu0 0.0
    %1738 = vmatpush.msra.mxu0 0.0
    %1739 = vmatpush.msra.mxu0 0.0
    %1740 = vmatpush.msra.mxu0 0.0
    %1741 = vmatpush.msra.mxu0 0.0
    %1742 = vmatpush.msra.mxu0 0.0
    %1743 = vmatpush.msra.mxu0 0.0
    %1744 = vmatpush.msra.mxu0 0.0
    %1745 = vmatpush.msra.mxu0 0.0
    %1746 = vmatpush.msra.mxu0 0.0
    %1747 = vmatpush.msra.mxu0 0.0
    %1748 = vmatpush.msra.mxu0 %v66
    %1749 = vmatmul.f32.gmra.mxu0 %v1731
    %v1750 = vpop.f32.mrf.mxu0
    %v1751 = vadd.f32 %v836, %v1750
    %1752 = vdwg.mxu0
    %v1753 = vadd.f32 %v1751, %v1638
    %v1754 = vrot.slane %v994, 6
    %v1756 = vrot.slane %v1126, 4
    %v1758 = vrot.slane %v1258, 2
    %v1760 = vrot.slane %v1505, 6
    %v1763 = vrot.slane %v1638, 4
    %v1766 = vrot.slane %v1753, 2
    %vm1768 = vcmask 1041408
    %v1769 = vsel %vm1768, %v862, %v1754
    %v1770 = vsel %vm83, %v1769, %v1756
    %vm1771 = vcmask 1045504
    %v1772 = vsel %vm1771, %v1770, %v1758
    %v1773 = vsel %vm1768, %v1390, %v1760
    %v1774 = vsel %vm83, %v1773, %v1763
    %v1775 = vsel %vm1771, %v1774, %v1766
    %1776 = vst.msk [vmem:[%s9] sm:$0xff] %vm76, %v1772
    %1777 = vst.msk [vmem:[%s9 + $0x8] sm:$0xff] %vm76, %v1775
    // Predicated region
    $region42: #{tpu_custom_call.1} parent=1 // pred_check
      _
    $region43: #{tpu_custom_call.1} parent=1 // pred_check_branch
      %1779 = sbr.rel (0) target = $region45
    $region44: #{tpu_custom_call.1} parent=1 // pred_region
      _
    $region45: #{tpu_custom_call.1} parent=1 // pred_fallthru
      _
    // Predicated region
    $region46: #{tpu_custom_call.1} parent=1 // pred_check
      _
    $region47: #{tpu_custom_call.1} parent=1 // pred_check_branch
      %1781 = sbr.rel (0) target = $region49
    $region48: #{tpu_custom_call.1} parent=1 // pred_region
      _
    $region49: #{tpu_custom_call.1} parent=1 // pred_fallthru
      _
    %1782 = vsyncpa [#allocation3], 1

</llo_original>
